<compile_context>
chip_gen: v6e
topology: v6e:2x2x1
jax: 0.10.0
libtpu: 0.0.40
codegen_flags: <defaults>
</compile_context>

<pallas_src>
import functools

import jax
import jax.numpy as jnp
import numpy as np
from jax.experimental import pallas as pl
from jax.experimental.pallas import tpu as pltpu


def _round_up(x, m):
    return ((x + m - 1) // m) * m


def _sigmoid(x):
    # sigmoid(x) == 0.5 * tanh(0.5 * x) + 0.5 : one EUP tanh + one VPU fma,
    # shorter dependency chain than exp + divide on the serial recurrence.
    return 0.5 * jnp.tanh(0.5 * x) + 0.5


# --------------------------------- kernel ------------------------------------

def _decoder_kernel(z_ref, x_ref, w_hc_ref, b_hc_ref, w_ih_ref, b_lstm_ref,
                    w_hh_ref, w_p_ref, b_p_ref,
                    y_ref, h_out_ref, c_out_ref,
                    h_scr, c_scr, out_scr,
                    *, Tc, Bb, H, M):
    f32 = jnp.float32
    tc = pl.program_id(1)          # time-chunk axis ("arbitrary", sequential)

    # ---- fc_hc: initial hidden / cell from z, once per batch block ----
    @pl.when(tc == 0)
    def _():
        hc = jnp.tanh(
            jnp.dot(z_ref[...], w_hc_ref[...], preferred_element_type=f32)
            + b_hc_ref[...])                                  # (Bb, 2H)
        h_scr[...] = hc[:, :H]
        c_scr[...] = hc[:, H:2 * H]

    w_hh = w_hh_ref[...]                                      # (H, 4H) resident
    wdt = w_hh.dtype                                          # bf16 (or f32)

    # ---- input projection for the whole chunk: off the serial critical path --
    x2 = x_ref[...].reshape(Tc * Bb, x_ref.shape[-1])         # (Tc*Bb, I)
    xw = (jnp.dot(x2.astype(wdt), w_ih_ref[...], preferred_element_type=f32)
          + b_lstm_ref[...])                                  # (Tc*Bb, 4H) i,f,o,g

    # ---- LSTM recurrence, unrolled only within the (small) chunk ----
    h = h_scr[...]
    c = c_scr[...]
    for t in range(Tc):                                       # Tc small -> cheap unroll
        gates = (xw[t * Bb:(t + 1) * Bb, :]
                 + jnp.dot(h.astype(wdt), w_hh, preferred_element_type=f32))
        sg = _sigmoid(gates[:, :3 * H])                       # i, f, o only
        g = jnp.tanh(gates[:, 3 * H:4 * H])                   # g only
        i = sg[:, 0 * H:1 * H]
        f = sg[:, 1 * H:2 * H]
        o = sg[:, 2 * H:3 * H]
        c = f * c + i * g
        h = o * jnp.tanh(c)
        out_scr[t * Bb:(t + 1) * Bb, :] = h                   # full-tile store (Bb=8)

    h_scr[...] = h                                            # carry to next chunk
    c_scr[...] = c
    h_out_ref[...] = h                                        # resident output;
    c_out_ref[...] = c                                        # last write wins

    # ---- fc_params + GMM-head activations, lane-dense (Ppad = 128) ----
    # w_p columns were permuted + zero-padded so the layout is
    # [pi(M) | mu_x(M) | mu_y(M) | sigma_x(M) | sigma_y(M) | rho(M) | pen(3) | 0..].
    y = (jnp.dot(out_scr[...].astype(wdt), w_p_ref[...],
                 preferred_element_type=f32) + b_p_ref[...])  # (Tc*Bb, Ppad)

    lane = jax.lax.broadcasted_iota(jnp.int32, y.shape, 1)
    pi_m = lane < M
    mu_m = (lane >= M) & (lane < 3 * M)
    sig_m = (lane >= 3 * M) & (lane < 5 * M)
    rho_m = (lane >= 5 * M) & (lane < 6 * M)
    pen_m = (lane >= 6 * M) & (lane < 6 * M + 3)

    neg = jnp.float32(-1e30)
    pi_max = jnp.max(jnp.where(pi_m, y, neg), axis=-1, keepdims=True)
    pen_max = jnp.max(jnp.where(pen_m, y, neg), axis=-1, keepdims=True)
    # ONE full-width exp serves pi-softmax numerators, pen-softmax numerators
    # and sigma = exp(y); all other / padded lanes get exp(-1e30) == 0.
    e = jnp.exp(jnp.where(pi_m, y - pi_max,
                jnp.where(pen_m, y - pen_max,
                jnp.where(sig_m, y, neg))))
    pi_sm = e * pl.reciprocal(
        jnp.sum(jnp.where(pi_m, e, 0.0), axis=-1, keepdims=True), approx=True)
    pen_sm = e * pl.reciprocal(
        jnp.sum(jnp.where(pen_m, e, 0.0), axis=-1, keepdims=True), approx=True)

    out = jnp.where(pi_m, pi_sm,
          jnp.where(mu_m, y,
          jnp.where(sig_m, e,
          jnp.where(rho_m, jnp.tanh(y),
          jnp.where(pen_m, pen_sm, 0.0)))))                    # padded lanes -> 0
    y_ref[...] = out.reshape(Tc, Bb, -1)


# ----------------------- one-time parameter preparation -----------------------

def prepare_decoder_params(params, *, M, H, weight_dtype=jnp.bfloat16):
    """One-time prep: transposes, gate-bias fusion, LSTM gate reorder to
    (i, f, o, g), fc_params column permutation + 128-lane padding, and bf16
    cast of the MXU weights (f32 accumulation stays in the kernel)."""
    f32 = jnp.float32
    P = 6 * M + 3
    Ppad = max(128, _round_up(P, 128))

    def reorder_gates(a):          # (..., 4H) PyTorch order i,f,g,o -> i,f,o,g
        return jnp.concatenate(
            [a[..., :2 * H], a[..., 3 * H:4 * H], a[..., 2 * H:3 * H]], axis=-1)

    w_ih = reorder_gates(params["lstm_w_ih"].T.astype(f32))            # (I, 4H)
    w_hh = reorder_gates(params["lstm_w_hh"].T.astype(f32))            # (H, 4H)
    b_lstm = reorder_gates(
        (params["lstm_b_ih"] + params["lstm_b_hh"]).astype(f32))[None, :]

    # column k*M + m of the permuted head  ==  original column 6*m + k
    perm = np.array([6 * m + k for k in range(6) for m in range(M)]
                    + [6 * M, 6 * M + 1, 6 * M + 2])
    w_p = params["fc_params_w"][perm, :].T.astype(f32)                 # (H, P)
    b_p = params["fc_params_b"][perm].astype(f32)                      # (P,)
    w_p_pad = jnp.zeros((H, Ppad), f32).at[:, :P].set(w_p)
    b_p_pad = jnp.zeros((1, Ppad), f32).at[:, :P].set(b_p[None, :])

    return {
        "w_hc": params["fc_hc_w"].T.astype(f32),                       # (Nz, 2H)
        "b_hc": params["fc_hc_b"].astype(f32)[None, :],                # (1, 2H)
        "w_ih": w_ih.astype(weight_dtype),                             # (I, 4H)
        "w_hh": w_hh.astype(weight_dtype),                             # (H, 4H)
        "b_lstm": b_lstm,                                              # (1, 4H) f32
        "w_p": w_p_pad.astype(weight_dtype),                           # (H, Ppad)
        "b_p": b_p_pad,                                                # (1, Ppad) f32
    }


# --------------------------------- wrapper ------------------------------------

def decoder_forward(prepped, inputs, z, *, M, H, Tc=None):
    """Pallas implementation of DecoderRNN.forward (training branch).

    inputs: (T, B, Nz+5), time-major, T = Nmax + 1.   z: (B, Nz).
    Returns (pi, mu_x, mu_y, sigma_x, sigma_y, rho_xy, q, hidden, cell).
    """
    # TODO(synk): eval branch (self.training == False, head on hN only) not implemented.
    f32 = jnp.float32
    T, B, I = inputs.shape
    Nz = prepped["w_hc"].shape[0]
    Ppad = prepped["w_p"].shape[1]

    B_pad = _round_up(B, 8)        # full f32 sublane tile -> unmasked stores
    Bb = B_pad                     # single batch block at toy sizes; at real B,
                                   # split into several blocks so the "parallel"
                                   # axis can use v7x's second TensorCore.
    if Tc is None:
        Tc = 4 if T % 4 == 0 else (2 if T % 2 == 0 else 1)
    # TODO(synk): general T would need a masked trailing chunk; here Tc | T.
    assert T % Tc == 0
    num_tc = T // Tc

    x = jnp.zeros((T, B_pad, I), f32).at[:, :B, :].set(inputs.astype(f32))
    z_p = jnp.zeros((B_pad, Nz), f32).at[:B, :].set(z.astype(f32))

    def _wspec(a):                 # whole-array, resident weight BlockSpec
        return pl.BlockSpec(a.shape, lambda b, t: (0,) * a.ndim)

    y, hN, cN = pl.pallas_call(
        functools.partial(_decoder_kernel, Tc=Tc, Bb=Bb, H=H, M=M),
        out_shape=(jax.ShapeDtypeStruct((T, B_pad, Ppad), f32),
                   jax.ShapeDtypeStruct((B_pad, H), f32),
                   jax.ShapeDtypeStruct((B_pad, H), f32)),
        grid_spec=pltpu.PrefetchScalarGridSpec(
            num_scalar_prefetch=0,
            grid=(B_pad // Bb, num_tc),            # (batch-block, time-chunk)
            in_specs=[
                pl.BlockSpec((Bb, Nz), lambda b, t: (b, 0)),        # z
                pl.BlockSpec((Tc, Bb, I), lambda b, t: (t, b, 0)),  # x chunk
                _wspec(prepped["w_hc"]), _wspec(prepped["b_hc"]),
                _wspec(prepped["w_ih"]), _wspec(prepped["b_lstm"]),
                _wspec(prepped["w_hh"]), _wspec(prepped["w_p"]),
                _wspec(prepped["b_p"]),
            ],
            out_specs=[
                pl.BlockSpec((Tc, Bb, Ppad), lambda b, t: (t, b, 0)),  # y chunk
                pl.BlockSpec((Bb, H), lambda b, t: (b, 0)),            # hN
                pl.BlockSpec((Bb, H), lambda b, t: (b, 0)),            # cN
            ],
            scratch_shapes=[
                pltpu.VMEM((Bb, H), f32),          # h carried across time chunks
                pltpu.VMEM((Bb, H), f32),          # c carried across time chunks
                pltpu.VMEM((Tc * Bb, H), f32),     # LSTM outputs of this chunk
            ]),
        compiler_params=pltpu.CompilerParams(
            dimension_semantics=("parallel", "arbitrary"),
            vmem_limit_bytes=32 * 1024 * 1024),
    )(z_p, x, prepped["w_hc"], prepped["b_hc"], prepped["w_ih"],
      prepped["b_lstm"], prepped["w_hh"], prepped["w_p"], prepped["b_p"])

    y = y[:, :B, :]                                   # drop batch padding
    pi = y[..., 0 * M:1 * M]
    mu_x = y[..., 1 * M:2 * M]
    mu_y = y[..., 2 * M:3 * M]
    sigma_x = y[..., 3 * M:4 * M]
    sigma_y = y[..., 4 * M:5 * M]
    rho_xy = y[..., 5 * M:6 * M]
    q = y[..., 6 * M:6 * M + 3]
    hidden = hN[None, :B, :]                          # (1, B, H) like PyTorch
    cell = cN[None, :B, :]
    return pi, mu_x, mu_y, sigma_x, sigma_y, rho_xy, q, hidden, cell


# --------------------------- pure-JAX reference -------------------------------

def reference_forward(params, inputs, z, *, M, H):
    T, B, _ = inputs.shape
    hc = jnp.tanh(z @ params["fc_hc_w"].T + params["fc_hc_b"])
    h, c = hc[:, :H], hc[:, H:]
    outs = []
    for t in range(T):
        gates = (inputs[t] @ params["lstm_w_ih"].T + params["lstm_b_ih"]
                 + h @ params["lstm_w_hh"].T + params["lstm_b_hh"])
        i = jax.nn.sigmoid(gates[:, :H])
        f = jax.nn.sigmoid(gates[:, H:2 * H])
        g = jnp.tanh(gates[:, 2 * H:3 * H])
        o = jax.nn.sigmoid(gates[:, 3 * H:])
        c = f * c + i * g
        h = o * jnp.tanh(c)
        outs.append(h)
    outputs = jnp.stack(outs)                                  # (T, B, H)
    y = outputs.reshape(-1, H) @ params["fc_params_w"].T + params["fc_params_b"]
    # exact torch.split(y, 6, 1) -> stack -> split(., 1, 2) semantics:
    pi = jax.nn.softmax(y[:, 0:6 * M:6], axis=-1).reshape(T, B, M)
    mu_x = y[:, 1:6 * M:6].reshape(T, B, M)
    mu_y = y[:, 2:6 * M:6].reshape(T, B, M)
    sigma_x = jnp.exp(y[:, 3:6 * M:6]).reshape(T, B, M)
    sigma_y = jnp.exp(y[:, 4:6 * M:6]).reshape(T, B, M)
    rho_xy = jnp.tanh(y[:, 5:6 * M:6]).reshape(T, B, M)
    q = jax.nn.softmax(y[:, 6 * M:], axis=-1).reshape(T, B, 3)
    return pi, mu_x, mu_y, sigma_x, sigma_y, rho_xy, q, h[None], c[None]


# ------------------------------------ main ------------------------------------

if __name__ == "__main__":
    class HP:
        Nz = 16
        dec_hidden_size = 32
        M = 4
        dropout = 0.1

    B = 2
    Nmax = 7
    T = Nmax + 1
    H = HP.dec_hidden_size
    I = HP.Nz + 5
    M = HP.M

    key = jax.random.PRNGKey(0)
    ks = jax.random.split(key, 10)
    s = 0.1
    params = {
        "fc_hc_w": s * jax.random.normal(ks[0], (2 * H, HP.Nz), jnp.float32),
        "fc_hc_b": s * jax.random.normal(ks[1], (2 * H,), jnp.float32),
        "lstm_w_ih": s * jax.random.normal(ks[2], (4 * H, I), jnp.float32),
        "lstm_w_hh": s * jax.random.normal(ks[3], (4 * H, H), jnp.float32),
        "lstm_b_ih": s * jax.random.normal(ks[4], (4 * H,), jnp.float32),
        "lstm_b_hh": s * jax.random.normal(ks[5], (4 * H,), jnp.float32),
        "fc_params_w": s * jax.random.normal(ks[6], (6 * M + 3, H), jnp.float32),
        "fc_params_b": s * jax.random.normal(ks[7], (6 * M + 3,), jnp.float32),
    }
    inputs = jax.random.normal(ks[8], (T, B, I), jnp.float32)
    z = jax.random.normal(ks[9], (B, HP.Nz), jnp.float32)

    ref = reference_forward(params, inputs, z, M=M, H=H)
    names = ["pi", "mu_x", "mu_y", "sigma_x", "sigma_y", "rho_xy", "q",
             "hidden", "cell"]

    fwd = jax.jit(functools.partial(decoder_forward, M=M, H=H))

    # f32-weight path: tight check.
    prepped32 = jax.tree_util.tree_map(
        jax.block_until_ready,
        prepare_decoder_params(params, M=M, H=H, weight_dtype=jnp.float32))
    out32 = jax.block_until_ready(fwd(prepped32, inputs, z))
    for name, a, b in zip(names, out32, ref):
        assert a.shape == b.shape, (name, a.shape, b.shape)
        assert jnp.allclose(a, b, rtol=1e-2, atol=1e-2), name

    # bf16-weight path (v6e/v7x MXU-native, f32 accumulation): looser check.
    prepped16 = jax.tree_util.tree_map(
        jax.block_until_ready, prepare_decoder_params(params, M=M, H=H))
    out16 = jax.block_until_ready(fwd(prepped16, inputs, z))
    for name, a, b in zip(names, out16, ref):
        assert a.shape == b.shape, (name, a.shape, b.shape)
        assert jnp.allclose(a, b, rtol=3e-2, atol=3e-2), name

    print("KERNEL_OK")
</pallas_src>

<mosaic_0001>
module attributes {stable_mosaic.version = 11 : i64} {
  func.func @_decoder_kernel(%arg0: i32, %arg1: i32, %arg2: memref<8x16xf32, #tpu.memory_space<vmem>>, %arg3: memref<4x8x21xf32, #tpu.memory_space<vmem>>, %arg4: memref<16x64xf32, #tpu.memory_space<vmem>>, %arg5: memref<1x64xf32, #tpu.memory_space<vmem>>, %arg6: memref<21x128xf32, #tpu.memory_space<vmem>>, %arg7: memref<1x128xf32, #tpu.memory_space<vmem>>, %arg8: memref<32x128xf32, #tpu.memory_space<vmem>>, %arg9: memref<32x128xf32, #tpu.memory_space<vmem>>, %arg10: memref<1x128xf32, #tpu.memory_space<vmem>>, %arg11: memref<4x8x128xf32, #tpu.memory_space<vmem>>, %arg12: memref<8x32xf32, #tpu.memory_space<vmem>>, %arg13: memref<8x32xf32, #tpu.memory_space<vmem>>, %arg14: memref<8x32xf32, #tpu.memory_space<vmem>>, %arg15: memref<8x32xf32, #tpu.memory_space<vmem>>, %arg16: memref<32x32xf32, #tpu.memory_space<vmem>>) attributes {dimension_semantics = [#tpu.dimension_semantics<parallel>, #tpu.dimension_semantics<arbitrary>], iteration_bounds = array<i64: 1, 2>, scalar_prefetch = 0 : i64, scratch_operands = 3 : i64, tpu.core_type = #tpu.core_type<tc>, window_params = [{transform_indices = @transform_0, window_bounds = array<i64: 8, 16>}, {transform_indices = @transform_1, window_bounds = array<i64: 4, 8, 21>}, {pipeline_mode = #tpu.pipeline_mode<synchronous>, transform_indices = @transform_2, window_bounds = array<i64: 16, 64>}, {pipeline_mode = #tpu.pipeline_mode<synchronous>, transform_indices = @transform_3, window_bounds = array<i64: 1, 64>}, {pipeline_mode = #tpu.pipeline_mode<synchronous>, transform_indices = @transform_4, window_bounds = array<i64: 21, 128>}, {pipeline_mode = #tpu.pipeline_mode<synchronous>, transform_indices = @transform_5, window_bounds = array<i64: 1, 128>}, {pipeline_mode = #tpu.pipeline_mode<synchronous>, transform_indices = @transform_6, window_bounds = array<i64: 32, 128>}, {pipeline_mode = #tpu.pipeline_mode<synchronous>, transform_indices = @transform_7, window_bounds = array<i64: 32, 128>}, {pipeline_mode = #tpu.pipeline_mode<synchronous>, transform_indices = @transform_8, window_bounds = array<i64: 1, 128>}, {transform_indices = @transform_9, window_bounds = array<i64: 4, 8, 128>}, {transform_indices = @transform_10, window_bounds = array<i64: 8, 32>}, {transform_indices = @transform_11, window_bounds = array<i64: 8, 32>}]} {
    %c0_i32 = arith.constant 0 : i32
    %0 = arith.cmpi eq, %arg1, %c0_i32 : i32
    %1 = arith.extui %0 : i1 to i32
    %c0_i32_0 = arith.constant 0 : i32
    %2 = arith.cmpi ne, %1, %c0_i32_0 : i32
    scf.if %2 {
      %c0_66 = arith.constant 0 : index
      %c0_67 = arith.constant 0 : index
      %174 = vector.load %arg2[%c0_66, %c0_67] : memref<8x16xf32, #tpu.memory_space<vmem>>, vector<8x16xf32>
      %c0_68 = arith.constant 0 : index
      %c0_69 = arith.constant 0 : index
      %175 = vector.load %arg4[%c0_68, %c0_69] : memref<16x64xf32, #tpu.memory_space<vmem>>, vector<16x64xf32>
      %cst_70 = arith.constant dense<0.000000e+00> : vector<8x64xf32>
      %176 = tpu.matmul %174, %175, %cst_70 {dimension_numbers = #tpu.dot_dimension_numbers<[1], [0], [0], [1], [0, 0, 1, 1], [], []>} : vector<8x16xf32>, vector<16x64xf32>, vector<8x64xf32> -> vector<8x64xf32>
      %c0_71 = arith.constant 0 : index
      %c0_72 = arith.constant 0 : index
      %177 = vector.load %arg5[%c0_71, %c0_72] : memref<1x64xf32, #tpu.memory_space<vmem>>, vector<1x64xf32>
      %178 = vector.broadcast %177 : vector<1x64xf32> to vector<8x64xf32>
      %179 = arith.addf %176, %178 : vector<8x64xf32>
      %180 = math.tanh %179 : vector<8x64xf32>
      %181 = vector.extract_strided_slice %180 {offsets = [0, 0], sizes = [8, 32], strides = [1, 1]} : vector<8x64xf32> to vector<8x32xf32>
      %c0_73 = arith.constant 0 : index
      %c0_74 = arith.constant 0 : index
      %182 = vector.load %arg14[%c0_73, %c0_74] : memref<8x32xf32, #tpu.memory_space<vmem>>, vector<8x32xf32>
      tpu.vector_store %arg14[%c0_73, %c0_74], %181 {strides = array<i32>} : memref<8x32xf32, #tpu.memory_space<vmem>>, vector<8x32xf32>,
      %183 = vector.extract_strided_slice %180 {offsets = [0, 32], sizes = [8, 32], strides = [1, 1]} : vector<8x64xf32> to vector<8x32xf32>
      %c0_75 = arith.constant 0 : index
      %c0_76 = arith.constant 0 : index
      %184 = vector.load %arg15[%c0_75, %c0_76] : memref<8x32xf32, #tpu.memory_space<vmem>>, vector<8x32xf32>
      tpu.vector_store %arg15[%c0_75, %c0_76], %183 {strides = array<i32>} : memref<8x32xf32, #tpu.memory_space<vmem>>, vector<8x32xf32>,
    } else {
    }
    %c0 = arith.constant 0 : index
    %c0_1 = arith.constant 0 : index
    %3 = vector.load %arg8[%c0, %c0_1] : memref<32x128xf32, #tpu.memory_space<vmem>>, vector<32x128xf32>
    %c0_2 = arith.constant 0 : index
    %c0_3 = arith.constant 0 : index
    %c0_4 = arith.constant 0 : index
    %4 = vector.load %arg3[%c0_2, %c0_3, %c0_4] : memref<4x8x21xf32, #tpu.memory_space<vmem>>, vector<4x8x21xf32>
    %5 = vector.shape_cast %4 : vector<4x8x21xf32> to vector<32x21xf32>
    %c0_5 = arith.constant 0 : index
    %c0_6 = arith.constant 0 : index
    %6 = vector.load %arg6[%c0_5, %c0_6] : memref<21x128xf32, #tpu.memory_space<vmem>>, vector<21x128xf32>
    %cst = arith.constant dense<0.000000e+00> : vector<32x128xf32>
    %7 = tpu.matmul %5, %6, %cst {dimension_numbers = #tpu.dot_dimension_numbers<[1], [0], [0], [1], [0, 0, 1, 1], [], []>} : vector<32x21xf32>, vector<21x128xf32>, vector<32x128xf32> -> vector<32x128xf32>
    %c0_7 = arith.constant 0 : index
    %c0_8 = arith.constant 0 : index
    %8 = vector.load %arg7[%c0_7, %c0_8] : memref<1x128xf32, #tpu.memory_space<vmem>>, vector<1x128xf32>
    %9 = vector.broadcast %8 : vector<1x128xf32> to vector<32x128xf32>
    %10 = arith.addf %7, %9 : vector<32x128xf32>
    %c0_9 = arith.constant 0 : index
    %c0_10 = arith.constant 0 : index
    %11 = vector.load %arg14[%c0_9, %c0_10] : memref<8x32xf32, #tpu.memory_space<vmem>>, vector<8x32xf32>
    %c0_11 = arith.constant 0 : index
    %c0_12 = arith.constant 0 : index
    %12 = vector.load %arg15[%c0_11, %c0_12] : memref<8x32xf32, #tpu.memory_space<vmem>>, vector<8x32xf32>
    %13 = vector.extract_strided_slice %10 {offsets = [0, 0], sizes = [8, 128], strides = [1, 1]} : vector<32x128xf32> to vector<8x128xf32>
    %cst_13 = arith.constant dense<0.000000e+00> : vector<8x128xf32>
    %14 = tpu.matmul %11, %3, %cst_13 {dimension_numbers = #tpu.dot_dimension_numbers<[1], [0], [0], [1], [0, 0, 1, 1], [], []>} : vector<8x32xf32>, vector<32x128xf32>, vector<8x128xf32> -> vector<8x128xf32>
    %15 = arith.addf %13, %14 : vector<8x128xf32>
    %16 = vector.extract_strided_slice %15 {offsets = [0, 0], sizes = [8, 96], strides = [1, 1]} : vector<8x128xf32> to vector<8x96xf32>
    %cst_14 = arith.constant 5.000000e-01 : f32
    %17 = vector.broadcast %cst_14 : f32 to vector<8x96xf32>
    %18 = arith.mulf %17, %16 : vector<8x96xf32>
    %19 = math.tanh %18 : vector<8x96xf32>
    %cst_15 = arith.constant 5.000000e-01 : f32
    %20 = vector.broadcast %cst_15 : f32 to vector<8x96xf32>
    %21 = arith.mulf %20, %19 : vector<8x96xf32>
    %cst_16 = arith.constant 5.000000e-01 : f32
    %22 = vector.broadcast %cst_16 : f32 to vector<8x96xf32>
    %23 = arith.addf %21, %22 : vector<8x96xf32>
    %24 = vector.extract_strided_slice %15 {offsets = [0, 96], sizes = [8, 32], strides = [1, 1]} : vector<8x128xf32> to vector<8x32xf32>
    %25 = math.tanh %24 : vector<8x32xf32>
    %26 = vector.extract_strided_slice %23 {offsets = [0, 0], sizes = [8, 32], strides = [1, 1]} : vector<8x96xf32> to vector<8x32xf32>
    %27 = vector.extract_strided_slice %23 {offsets = [0, 32], sizes = [8, 32], strides = [1, 1]} : vector<8x96xf32> to vector<8x32xf32>
    %28 = vector.extract_strided_slice %23 {offsets = [0, 64], sizes = [8, 32], strides = [1, 1]} : vector<8x96xf32> to vector<8x32xf32>
    %29 = arith.mulf %27, %12 : vector<8x32xf32>
    %30 = arith.mulf %26, %25 : vector<8x32xf32>
    %31 = arith.addf %29, %30 : vector<8x32xf32>
    %32 = math.tanh %31 : vector<8x32xf32>
    %33 = arith.mulf %28, %32 : vector<8x32xf32>
    %c0_17 = arith.constant 0 : index
    %c0_18 = arith.constant 0 : index
    %34 = vector.load %arg16[%c0_17, %c0_18] : memref<32x32xf32, #tpu.memory_space<vmem>>, vector<8x32xf32>
    tpu.vector_store %arg16[%c0_17, %c0_18], %33 {strides = array<i32>} : memref<32x32xf32, #tpu.memory_space<vmem>>, vector<8x32xf32>,
    %35 = vector.extract_strided_slice %10 {offsets = [8, 0], sizes = [8, 128], strides = [1, 1]} : vector<32x128xf32> to vector<8x128xf32>
    %cst_19 = arith.constant dense<0.000000e+00> : vector<8x128xf32>
    %36 = tpu.matmul %33, %3, %cst_19 {dimension_numbers = #tpu.dot_dimension_numbers<[1], [0], [0], [1], [0, 0, 1, 1], [], []>} : vector<8x32xf32>, vector<32x128xf32>, vector<8x128xf32> -> vector<8x128xf32>
    %37 = arith.addf %35, %36 : vector<8x128xf32>
    %38 = vector.extract_strided_slice %37 {offsets = [0, 0], sizes = [8, 96], strides = [1, 1]} : vector<8x128xf32> to vector<8x96xf32>
    %cst_20 = arith.constant 5.000000e-01 : f32
    %39 = vector.broadcast %cst_20 : f32 to vector<8x96xf32>
    %40 = arith.mulf %39, %38 : vector<8x96xf32>
    %41 = math.tanh %40 : vector<8x96xf32>
    %cst_21 = arith.constant 5.000000e-01 : f32
    %42 = vector.broadcast %cst_21 : f32 to vector<8x96xf32>
    %43 = arith.mulf %42, %41 : vector<8x96xf32>
    %cst_22 = arith.constant 5.000000e-01 : f32
    %44 = vector.broadcast %cst_22 : f32 to vector<8x96xf32>
    %45 = arith.addf %43, %44 : vector<8x96xf32>
    %46 = vector.extract_strided_slice %37 {offsets = [0, 96], sizes = [8, 32], strides = [1, 1]} : vector<8x128xf32> to vector<8x32xf32>
    %47 = math.tanh %46 : vector<8x32xf32>
    %48 = vector.extract_strided_slice %45 {offsets = [0, 0], sizes = [8, 32], strides = [1, 1]} : vector<8x96xf32> to vector<8x32xf32>
    %49 = vector.extract_strided_slice %45 {offsets = [0, 32], sizes = [8, 32], strides = [1, 1]} : vector<8x96xf32> to vector<8x32xf32>
    %50 = vector.extract_strided_slice %45 {offsets = [0, 64], sizes = [8, 32], strides = [1, 1]} : vector<8x96xf32> to vector<8x32xf32>
    %51 = arith.mulf %49, %31 : vector<8x32xf32>
    %52 = arith.mulf %48, %47 : vector<8x32xf32>
    %53 = arith.addf %51, %52 : vector<8x32xf32>
    %54 = math.tanh %53 : vector<8x32xf32>
    %55 = arith.mulf %50, %54 : vector<8x32xf32>
    %c8 = arith.constant 8 : index
    %c0_23 = arith.constant 0 : index
    %56 = vector.load %arg16[%c8, %c0_23] : memref<32x32xf32, #tpu.memory_space<vmem>>, vector<8x32xf32>
    tpu.vector_store %arg16[%c8, %c0_23], %55 {strides = array<i32>} : memref<32x32xf32, #tpu.memory_space<vmem>>, vector<8x32xf32>,
    %57 = vector.extract_strided_slice %10 {offsets = [16, 0], sizes = [8, 128], strides = [1, 1]} : vector<32x128xf32> to vector<8x128xf32>
    %cst_24 = arith.constant dense<0.000000e+00> : vector<8x128xf32>
    %58 = tpu.matmul %55, %3, %cst_24 {dimension_numbers = #tpu.dot_dimension_numbers<[1], [0], [0], [1], [0, 0, 1, 1], [], []>} : vector<8x32xf32>, vector<32x128xf32>, vector<8x128xf32> -> vector<8x128xf32>
    %59 = arith.addf %57, %58 : vector<8x128xf32>
    %60 = vector.extract_strided_slice %59 {offsets = [0, 0], sizes = [8, 96], strides = [1, 1]} : vector<8x128xf32> to vector<8x96xf32>
    %cst_25 = arith.constant 5.000000e-01 : f32
    %61 = vector.broadcast %cst_25 : f32 to vector<8x96xf32>
    %62 = arith.mulf %61, %60 : vector<8x96xf32>
    %63 = math.tanh %62 : vector<8x96xf32>
    %cst_26 = arith.constant 5.000000e-01 : f32
    %64 = vector.broadcast %cst_26 : f32 to vector<8x96xf32>
    %65 = arith.mulf %64, %63 : vector<8x96xf32>
    %cst_27 = arith.constant 5.000000e-01 : f32
    %66 = vector.broadcast %cst_27 : f32 to vector<8x96xf32>
    %67 = arith.addf %65, %66 : vector<8x96xf32>
    %68 = vector.extract_strided_slice %59 {offsets = [0, 96], sizes = [8, 32], strides = [1, 1]} : vector<8x128xf32> to vector<8x32xf32>
    %69 = math.tanh %68 : vector<8x32xf32>
    %70 = vector.extract_strided_slice %67 {offsets = [0, 0], sizes = [8, 32], strides = [1, 1]} : vector<8x96xf32> to vector<8x32xf32>
    %71 = vector.extract_strided_slice %67 {offsets = [0, 32], sizes = [8, 32], strides = [1, 1]} : vector<8x96xf32> to vector<8x32xf32>
    %72 = vector.extract_strided_slice %67 {offsets = [0, 64], sizes = [8, 32], strides = [1, 1]} : vector<8x96xf32> to vector<8x32xf32>
    %73 = arith.mulf %71, %53 : vector<8x32xf32>
    %74 = arith.mulf %70, %69 : vector<8x32xf32>
    %75 = arith.addf %73, %74 : vector<8x32xf32>
    %76 = math.tanh %75 : vector<8x32xf32>
    %77 = arith.mulf %72, %76 : vector<8x32xf32>
    %c16 = arith.constant 16 : index
    %c0_28 = arith.constant 0 : index
    %78 = vector.load %arg16[%c16, %c0_28] : memref<32x32xf32, #tpu.memory_space<vmem>>, vector<8x32xf32>
    tpu.vector_store %arg16[%c16, %c0_28], %77 {strides = array<i32>} : memref<32x32xf32, #tpu.memory_space<vmem>>, vector<8x32xf32>,
    %79 = vector.extract_strided_slice %10 {offsets = [24, 0], sizes = [8, 128], strides = [1, 1]} : vector<32x128xf32> to vector<8x128xf32>
    %cst_29 = arith.constant dense<0.000000e+00> : vector<8x128xf32>
    %80 = tpu.matmul %77, %3, %cst_29 {dimension_numbers = #tpu.dot_dimension_numbers<[1], [0], [0], [1], [0, 0, 1, 1], [], []>} : vector<8x32xf32>, vector<32x128xf32>, vector<8x128xf32> -> vector<8x128xf32>
    %81 = arith.addf %79, %80 : vector<8x128xf32>
    %82 = vector.extract_strided_slice %81 {offsets = [0, 0], sizes = [8, 96], strides = [1, 1]} : vector<8x128xf32> to vector<8x96xf32>
    %cst_30 = arith.constant 5.000000e-01 : f32
    %83 = vector.broadcast %cst_30 : f32 to vector<8x96xf32>
    %84 = arith.mulf %83, %82 : vector<8x96xf32>
    %85 = math.tanh %84 : vector<8x96xf32>
    %cst_31 = arith.constant 5.000000e-01 : f32
    %86 = vector.broadcast %cst_31 : f32 to vector<8x96xf32>
    %87 = arith.mulf %86, %85 : vector<8x96xf32>
    %cst_32 = arith.constant 5.000000e-01 : f32
    %88 = vector.broadcast %cst_32 : f32 to vector<8x96xf32>
    %89 = arith.addf %87, %88 : vector<8x96xf32>
    %90 = vector.extract_strided_slice %81 {offsets = [0, 96], sizes = [8, 32], strides = [1, 1]} : vector<8x128xf32> to vector<8x32xf32>
    %91 = math.tanh %90 : vector<8x32xf32>
    %92 = vector.extract_strided_slice %89 {offsets = [0, 0], sizes = [8, 32], strides = [1, 1]} : vector<8x96xf32> to vector<8x32xf32>
    %93 = vector.extract_strided_slice %89 {offsets = [0, 32], sizes = [8, 32], strides = [1, 1]} : vector<8x96xf32> to vector<8x32xf32>
    %94 = vector.extract_strided_slice %89 {offsets = [0, 64], sizes = [8, 32], strides = [1, 1]} : vector<8x96xf32> to vector<8x32xf32>
    %95 = arith.mulf %93, %75 : vector<8x32xf32>
    %96 = arith.mulf %92, %91 : vector<8x32xf32>
    %97 = arith.addf %95, %96 : vector<8x32xf32>
    %98 = math.tanh %97 : vector<8x32xf32>
    %99 = arith.mulf %94, %98 : vector<8x32xf32>
    %c24 = arith.constant 24 : index
    %c0_33 = arith.constant 0 : index
    %100 = vector.load %arg16[%c24, %c0_33] : memref<32x32xf32, #tpu.memory_space<vmem>>, vector<8x32xf32>
    tpu.vector_store %arg16[%c24, %c0_33], %99 {strides = array<i32>} : memref<32x32xf32, #tpu.memory_space<vmem>>, vector<8x32xf32>,
    %c0_34 = arith.constant 0 : index
    %c0_35 = arith.constant 0 : index
    %101 = vector.load %arg14[%c0_34, %c0_35] : memref<8x32xf32, #tpu.memory_space<vmem>>, vector<8x32xf32>
    tpu.vector_store %arg14[%c0_34, %c0_35], %99 {strides = array<i32>} : memref<8x32xf32, #tpu.memory_space<vmem>>, vector<8x32xf32>,
    %c0_36 = arith.constant 0 : index
    %c0_37 = arith.constant 0 : index
    %102 = vector.load %arg15[%c0_36, %c0_37] : memref<8x32xf32, #tpu.memory_space<vmem>>, vector<8x32xf32>
    tpu.vector_store %arg15[%c0_36, %c0_37], %97 {strides = array<i32>} : memref<8x32xf32, #tpu.memory_space<vmem>>, vector<8x32xf32>,
    %c0_38 = arith.constant 0 : index
    %c0_39 = arith.constant 0 : index
    %103 = vector.load %arg12[%c0_38, %c0_39] : memref<8x32xf32, #tpu.memory_space<vmem>>, vector<8x32xf32>
    tpu.vector_store %arg12[%c0_38, %c0_39], %99 {strides = array<i32>} : memref<8x32xf32, #tpu.memory_space<vmem>>, vector<8x32xf32>,
    %c0_40 = arith.constant 0 : index
    %c0_41 = arith.constant 0 : index
    %104 = vector.load %arg13[%c0_40, %c0_41] : memref<8x32xf32, #tpu.memory_space<vmem>>, vector<8x32xf32>
    tpu.vector_store %arg13[%c0_40, %c0_41], %97 {strides = array<i32>} : memref<8x32xf32, #tpu.memory_space<vmem>>, vector<8x32xf32>,
    %c0_42 = arith.constant 0 : index
    %c0_43 = arith.constant 0 : index
    %105 = vector.load %arg16[%c0_42, %c0_43] : memref<32x32xf32, #tpu.memory_space<vmem>>, vector<32x32xf32>
    %c0_44 = arith.constant 0 : index
    %c0_45 = arith.constant 0 : index
    %106 = vector.load %arg9[%c0_44, %c0_45] : memref<32x128xf32, #tpu.memory_space<vmem>>, vector<32x128xf32>
    %cst_46 = arith.constant dense<0.000000e+00> : vector<32x128xf32>
    %107 = tpu.matmul %105, %106, %cst_46 {dimension_numbers = #tpu.dot_dimension_numbers<[1], [0], [0], [1], [0, 0, 1, 1], [], []>} : vector<32x32xf32>, vector<32x128xf32>, vector<32x128xf32> -> vector<32x128xf32>
    %c0_47 = arith.constant 0 : index
    %c0_48 = arith.constant 0 : index
    %108 = vector.load %arg10[%c0_47, %c0_48] : memref<1x128xf32, #tpu.memory_space<vmem>>, vector<1x128xf32>
    %109 = vector.broadcast %108 : vector<1x128xf32> to vector<32x128xf32>
    %110 = arith.addf %107, %109 : vector<32x128xf32>
    %111 = tpu.iota {dimensions = array<i32: 1>} : vector<32x128xi32>
    %c4_i32 = arith.constant 4 : i32
    %112 = vector.broadcast %c4_i32 : i32 to vector<32x128xi32>
    %113 = arith.cmpi slt, %111, %112 : vector<32x128xi32>
    %c4_i32_49 = arith.constant 4 : i32
    %114 = vector.broadcast %c4_i32_49 : i32 to vector<32x128xi32>
    %115 = arith.cmpi sge, %111, %114 : vector<32x128xi32>
    %c12_i32 = arith.constant 12 : i32
    %116 = vector.broadcast %c12_i32 : i32 to vector<32x128xi32>
    %117 = arith.cmpi slt, %111, %116 : vector<32x128xi32>
    %118 = arith.andi %115, %117 : vector<32x128xi1>
    %c12_i32_50 = arith.constant 12 : i32
    %119 = vector.broadcast %c12_i32_50 : i32 to vector<32x128xi32>
    %120 = arith.cmpi sge, %111, %119 : vector<32x128xi32>
    %c20_i32 = arith.constant 20 : i32
    %121 = vector.broadcast %c20_i32 : i32 to vector<32x128xi32>
    %122 = arith.cmpi slt, %111, %121 : vector<32x128xi32>
    %123 = arith.andi %120, %122 : vector<32x128xi1>
    %c20_i32_51 = arith.constant 20 : i32
    %124 = vector.broadcast %c20_i32_51 : i32 to vector<32x128xi32>
    %125 = arith.cmpi sge, %111, %124 : vector<32x128xi32>
    %c24_i32 = arith.constant 24 : i32
    %126 = vector.broadcast %c24_i32 : i32 to vector<32x128xi32>
    %127 = arith.cmpi slt, %111, %126 : vector<32x128xi32>
    %128 = arith.andi %125, %127 : vector<32x128xi1>
    %c24_i32_52 = arith.constant 24 : i32
    %129 = vector.broadcast %c24_i32_52 : i32 to vector<32x128xi32>
    %130 = arith.cmpi sge, %111, %129 : vector<32x128xi32>
    %c27_i32 = arith.constant 27 : i32
    %131 = vector.broadcast %c27_i32 : i32 to vector<32x128xi32>
    %132 = arith.cmpi slt, %111, %131 : vector<32x128xi32>
    %133 = arith.andi %130, %132 : vector<32x128xi1>
    %cst_53 = arith.constant -1.000000e+30 : f32
    %134 = vector.broadcast %cst_53 : f32 to vector<32x128xf32>
    %135 = arith.select %113, %110, %134 : vector<32x128xi1>, vector<32x128xf32>
    %cst_54 = arith.constant dense<0xFF800000> : vector<32xf32>
    %136 = vector.multi_reduction <maximumf>, %135, %cst_54 [1] : vector<32x128xf32> to vector<32xf32>
    %137 = vector.shape_cast %136 : vector<32xf32> to vector<32x1xf32>
    %cst_55 = arith.constant -1.000000e+30 : f32
    %138 = vector.broadcast %cst_55 : f32 to vector<32x128xf32>
    %139 = arith.select %133, %110, %138 : vector<32x128xi1>, vector<32x128xf32>
    %cst_56 = arith.constant dense<0xFF800000> : vector<32xf32>
    %140 = vector.multi_reduction <maximumf>, %139, %cst_56 [1] : vector<32x128xf32> to vector<32xf32>
    %141 = vector.shape_cast %140 : vector<32xf32> to vector<32x1xf32>
    %142 = vector.broadcast %137 : vector<32x1xf32> to vector<32x128xf32>
    %143 = arith.subf %110, %142 : vector<32x128xf32>
    %144 = vector.broadcast %141 : vector<32x1xf32> to vector<32x128xf32>
    %145 = arith.subf %110, %144 : vector<32x128xf32>
    %cst_57 = arith.constant -1.000000e+30 : f32
    %146 = vector.broadcast %cst_57 : f32 to vector<32x128xf32>
    %147 = arith.select %123, %110, %146 : vector<32x128xi1>, vector<32x128xf32>
    %148 = arith.select %133, %145, %147 : vector<32x128xi1>, vector<32x128xf32>
    %149 = arith.select %113, %143, %148 : vector<32x128xi1>, vector<32x128xf32>
    %150 = math.exp %149 : vector<32x128xf32>
    %cst_58 = arith.constant 0.000000e+00 : f32
    %151 = vector.broadcast %cst_58 : f32 to vector<32x128xf32>
    %152 = arith.select %113, %150, %151 : vector<32x128xi1>, vector<32x128xf32>
    %cst_59 = arith.constant dense<0.000000e+00> : vector<32xf32>
    %153 = vector.multi_reduction <add>, %152, %cst_59 [1] : vector<32x128xf32> to vector<32xf32>
    %154 = vector.shape_cast %153 : vector<32xf32> to vector<32x1xf32>
    %155 = tpu.reciprocal %154 {approx = true} : vector<32x1xf32> -> vector<32x1xf32>
    %156 = vector.broadcast %155 : vector<32x1xf32> to vector<32x128xf32>
    %157 = arith.mulf %150, %156 : vector<32x128xf32>
    %cst_60 = arith.constant 0.000000e+00 : f32
    %158 = vector.broadcast %cst_60 : f32 to vector<32x128xf32>
    %159 = arith.select %133, %150, %158 : vector<32x128xi1>, vector<32x128xf32>
    %cst_61 = arith.constant dense<0.000000e+00> : vector<32xf32>
    %160 = vector.multi_reduction <add>, %159, %cst_61 [1] : vector<32x128xf32> to vector<32xf32>
    %161 = vector.shape_cast %160 : vector<32xf32> to vector<32x1xf32>
    %162 = tpu.reciprocal %161 {approx = true} : vector<32x1xf32> -> vector<32x1xf32>
    %163 = vector.broadcast %162 : vector<32x1xf32> to vector<32x128xf32>
    %164 = arith.mulf %150, %163 : vector<32x128xf32>
    %165 = math.tanh %110 : vector<32x128xf32>
    %cst_62 = arith.constant 0.000000e+00 : f32
    %166 = vector.broadcast %cst_62 : f32 to vector<32x128xf32>
    %167 = arith.select %133, %164, %166 : vector<32x128xi1>, vector<32x128xf32>
    %168 = arith.select %128, %165, %167 : vector<32x128xi1>, vector<32x128xf32>
    %169 = arith.select %123, %150, %168 : vector<32x128xi1>, vector<32x128xf32>
    %170 = arith.select %118, %110, %169 : vector<32x128xi1>, vector<32x128xf32>
    %171 = arith.select %113, %157, %170 : vector<32x128xi1>, vector<32x128xf32>
    %172 = vector.shape_cast %171 : vector<32x128xf32> to vector<4x8x128xf32>
    %c0_63 = arith.constant 0 : index
    %c0_64 = arith.constant 0 : index
    %c0_65 = arith.constant 0 : index
    %173 = vector.load %arg11[%c0_63, %c0_64, %c0_65] : memref<4x8x128xf32, #tpu.memory_space<vmem>>, vector<4x8x128xf32>
    tpu.vector_store %arg11[%c0_63, %c0_64, %c0_65], %172 {strides = array<i32>} : memref<4x8x128xf32, #tpu.memory_space<vmem>>, vector<4x8x128xf32>,
    return
  }
  func.func @transform_0(%arg0: i32, %arg1: i32) -> (i32, i32) {
    %c0_i32 = arith.constant 0 : i32
    %c0_i32_0 = arith.constant 0 : i32
    return %arg0, %c0_i32 : i32, i32
  }
  func.func @transform_1(%arg0: i32, %arg1: i32) -> (i32, i32, i32) {
    %c0_i32 = arith.constant 0 : i32
    %c0_i32_0 = arith.constant 0 : i32
    return %arg1, %arg0, %c0_i32 : i32, i32, i32
  }
  func.func @transform_2(%arg0: i32, %arg1: i32) -> (i32, i32) {
    %c0_i32 = arith.constant 0 : i32
    %c0_i32_0 = arith.constant 0 : i32
    %c0_i32_1 = arith.constant 0 : i32
    return %c0_i32, %c0_i32_0 : i32, i32
  }
  func.func @transform_3(%arg0: i32, %arg1: i32) -> (i32, i32) {
    %c0_i32 = arith.constant 0 : i32
    %c0_i32_0 = arith.constant 0 : i32
    %c0_i32_1 = arith.constant 0 : i32
    return %c0_i32, %c0_i32_0 : i32, i32
  }
  func.func @transform_4(%arg0: i32, %arg1: i32) -> (i32, i32) {
    %c0_i32 = arith.constant 0 : i32
    %c0_i32_0 = arith.constant 0 : i32
    %c0_i32_1 = arith.constant 0 : i32
    return %c0_i32, %c0_i32_0 : i32, i32
  }
  func.func @transform_5(%arg0: i32, %arg1: i32) -> (i32, i32) {
    %c0_i32 = arith.constant 0 : i32
    %c0_i32_0 = arith.constant 0 : i32
    %c0_i32_1 = arith.constant 0 : i32
    return %c0_i32, %c0_i32_0 : i32, i32
  }
  func.func @transform_6(%arg0: i32, %arg1: i32) -> (i32, i32) {
    %c0_i32 = arith.constant 0 : i32
    %c0_i32_0 = arith.constant 0 : i32
    %c0_i32_1 = arith.constant 0 : i32
    return %c0_i32, %c0_i32_0 : i32, i32
  }
  func.func @transform_7(%arg0: i32, %arg1: i32) -> (i32, i32) {
    %c0_i32 = arith.constant 0 : i32
    %c0_i32_0 = arith.constant 0 : i32
    %c0_i32_1 = arith.constant 0 : i32
    return %c0_i32, %c0_i32_0 : i32, i32
  }
  func.func @transform_8(%arg0: i32, %arg1: i32) -> (i32, i32) {
    %c0_i32 = arith.constant 0 : i32
    %c0_i32_0 = arith.constant 0 : i32
    %c0_i32_1 = arith.constant 0 : i32
    return %c0_i32, %c0_i32_0 : i32, i32
  }
  func.func @transform_9(%arg0: i32, %arg1: i32) -> (i32, i32, i32) {
    %c0_i32 = arith.constant 0 : i32
    %c0_i32_0 = arith.constant 0 : i32
    return %arg1, %arg0, %c0_i32 : i32, i32, i32
  }
  func.func @transform_10(%arg0: i32, %arg1: i32) -> (i32, i32) {
    %c0_i32 = arith.constant 0 : i32
    %c0_i32_0 = arith.constant 0 : i32
    return %arg0, %c0_i32 : i32, i32
  }
  func.func @transform_11(%arg0: i32, %arg1: i32) -> (i32, i32) {
    %c0_i32 = arith.constant 0 : i32
    %c0_i32_0 = arith.constant 0 : i32
    return %arg0, %c0_i32 : i32, i32
  }
}

</mosaic_0001>

<llo_original>
// kernel: decoder_forward.1
$region0: #{decoder_forward.1}
  #allocation0 [shape = 'u32[]', space=smem, size = 0x4, offset = 0x4, fixed_abs, tag = 'smem constant byte address 0x4 - core index']
  #allocation1 [shape = 'u32[144,128]{1,0:T(1,128)}', space=vmem, size = 0x12000, scoped, tag = 'internal scratch']
  #allocation2 [shape = 'f32[8,32]{1,0:T(8,128)}', space=vmem, size = 0x1000, scoped, tag = 'scratch operand']
  #allocation3 [shape = 'f32[8,32]{1,0:T(8,128)}', space=vmem, size = 0x1000, scoped, tag = 'scratch operand']
  #allocation4 [shape = 'f32[32,32]{1,0:T(8,128)}', space=vmem, size = 0x4000, scoped, tag = 'scratch operand']
  %s0 = inlined_call_operand.vmem [shape: f32[8,16], index: 0, kind: input, shape index: {}]
  %s1 = inlined_call_operand.vmem [shape: f32[8,8,21], index: 1, kind: input, shape index: {}]
  %s2 = inlined_call_operand.hbm [shape: f32[16,64], index: 2, kind: input, shape index: {}]
  %s3 = inlined_call_operand.hbm [shape: f32[1,64], index: 3, kind: input, shape index: {}]
  %s4 = inlined_call_operand.vmem [shape: f32[21,128], index: 4, kind: input, shape index: {}]
  %s5 = inlined_call_operand.hbm [shape: f32[1,128], index: 5, kind: input, shape index: {}]
  %s6 = inlined_call_operand.vmem [shape: f32[32,128], index: 6, kind: input, shape index: {}]
  %s7 = inlined_call_operand.vmem [shape: f32[32,128], index: 7, kind: input, shape index: {}]
  %s8 = inlined_call_operand.hbm [shape: f32[1,128], index: 8, kind: input, shape index: {}]
  %s9 = inlined_call_operand.vmem [shape: f32[8,8,128], index: 9, kind: output, shape index: {0}]
  %s10 = inlined_call_operand.vmem [shape: f32[8,32], index: 10, kind: output, shape index: {1}]
  %s11 = inlined_call_operand.vmem [shape: f32[8,32], index: 11, kind: output, shape index: {2}]
  %12 = xla_tuple %s9, %s10, %s11
  %s13 = sld [smem:[#allocation0]]
  $region105: #{decoder_forward.1} parent=0
    _
  %s15 = ssub.s32 1, %s13
  %s16 = scalar_select 0, %s15, %s13
  $region1: #{decoder_forward.1} parent=0
    #allocation5 [shape = 'u8[8192]{0}', space=vmem, size = 0x2000, scoped, tag = 'input window, operand 2, single buffered']
    #allocation6 [shape = 's32[2]{0}', space=sflag, size = 0x8, scoped, tag = 'scoped memory for decoder_forward.1']
    #allocation7 [shape = 'u8[512]{0}', space=vmem, size = 0x400, scoped, tag = 'input window, operand 3, single buffered']
    #allocation8 [shape = 's32[1]{0}', space=sflag, size = 0x4, scoped, tag = 'scoped memory for decoder_forward.1']
    #allocation9 [shape = 'u8[512]{0}', space=vmem, size = 0x400, scoped, tag = 'input window, operand 5, single buffered']
    #allocation10 [shape = 'u8[512]{0}', space=vmem, size = 0x400, scoped, tag = 'input window, operand 8, single buffered']
    #allocation11 [shape = 's32[1]{0}', space=sflag, size = 0x4, scoped, tag = 'scoped memory for decoder_forward.1']
    %17 = vsyncpa [#allocation6], 0
    %18 = vsyncpa [#allocation8], 0
    %19 = vsyncpa [#allocation11], 0
    loop: start=0, step=1, limit=4
    $region2: #{decoder_forward.1} parent=1 // loop_pre_header
      _
    $region3: #{decoder_forward.1} parent=1 // loop_header
      %s21 = sphi 0, %s25
      %p22 = scmp.ge.s32.totalorder %s21, 4
      %s28 = sphi 0, %s40
      %s29 = sphi 0, %s36
      %s30 = sphi 0, %s28
      %s31 = sphi 0, %s29
      %s32 = sphi 0, %s30
      %s33 = sphi 0, %s31
      %s43 = sphi 0, %s45
      %s46 = sphi 0, %s43
      %s47 = sphi 0, %s46
      %s63 = sphi 0, %s47
      %s71 = sphi 0, %s73
      %s74 = sphi 0, %s71
      %s75 = sphi 0, %s74
      %s91 = sphi 0, %s75
      %s95 = sphi 0, %s95
      %s97 = sphi 0, %s95
      %s98 = sphi 0, %s97
      %s112 = sphi 0, %s98
      %s116 = sphi 0, %s116
      %s118 = sphi 0, %s116
      %s119 = sphi 0, %s118
      %s133 = sphi 0, %s119
      %s137 = sphi 0, %s137
      %s139 = sphi 0, %s137
      %s140 = sphi 0, %s139
      %s154 = sphi 0, %s140
      %s158 = sphi 0, %s158
      %s160 = sphi 0, %s158
      %s161 = sphi 0, %s160
      %s175 = sphi 0, %s161
      %s179 = sphi 0, %s179
      %s181 = sphi 0, %s179
      %s182 = sphi 0, %s181
      %s196 = sphi 0, %s182
      %s200 = sphi 0, %s200
      %s202 = sphi 0, %s200
      %s203 = sphi 0, %s202
      %s217 = sphi 0, %s203
      %s221 = sphi 0, %s221
      %s223 = sphi 0, %s221
      %s224 = sphi 0, %s223
      %s238 = sphi 0, %s224
      %s246 = sphi 0, %s248
      %s249 = sphi 0, %s246
      %s250 = sphi 0, %s249
      %s266 = sphi 0, %s250
      %s272 = sphi 0, %s274
      %s275 = sphi 0, %s272
      %s276 = sphi 0, %s275
      %s292 = sphi 0, %s276
      %s298 = sphi 0, %s300
      %s301 = sphi 0, %s298
      %s302 = sphi 0, %s301
      %s318 = sphi 0, %s302
    $region4: #{decoder_forward.1} parent=1 // loop_header_branch
      %24 = sbr.rel (%p22) target = $region8
    $region5: #{decoder_forward.1} parent=1 // loop_body
      %s26 = ssub.s32 %s21, 1
      %s27 = ssub.s32 %s21, 2
      %s34 = sadd.s32 1, %s29
      %p35 = scmp.ge.s32.totalorder %s34, 2
      %s36 = scalar_select %p35, 0, %s34
      %s37 = sadd.s32 1, %s28
      %s38 = scalar_select %p35, %s37, %s28
      %p39 = scmp.ge.s32.totalorder %s38, 1
      %s40 = scalar_select %p39, 0, %s38
      %s41 = ssub.s32 %s28, %s40
      %p42 = scmp.eq.s32.totalorder %s41, 0
      %s44 = sadd.s32 %s43, 1
      %s45 = scalar_select %p42, %s43, %s44
      %p48 = pneg %p42
      %p49 = scmp.eq.s32.totalorder %s21, 1
      %p50 = por %p48, %p49
      %p51 = scmp.ne.s32.totalorder %s43, %s46
      %p52 = scmp.eq.s32.totalorder %s21, 0
      %p53 = por %p51, %p52
      %p54 = scmp.ne.s32.totalorder %s43, %s46
      %p55 = scmp.eq.s32.totalorder %s26, 1
      %p56 = por %p54, %p55
      %p57 = scmp.ne.s32.totalorder %s46, %s47
      %p58 = scmp.eq.s32.totalorder %s26, 0
      %p59 = por %p57, %p58
      %p60 = scmp.ne.s32.totalorder %s46, %s47
      %p61 = scmp.eq.s32.totalorder %s27, 1
      %p62 = por %p60, %p61
      %p64 = scmp.ne.s32.totalorder %s47, %s63
      %p65 = scmp.eq.s32.totalorder %s27, 0
      %p66 = por %p64, %p65
      %s67 = ssub.s32 %s29, %s36
      %s68 = ssub.s32 %s28, %s40
      %s69 = sor.u32 %s67, %s68
      %p70 = scmp.eq.s32.totalorder %s69, 0
      %s72 = sadd.s32 %s71, 1
      %s73 = scalar_select %p70, %s71, %s72
      %p76 = pneg %p70
      %p77 = scmp.eq.s32.totalorder %s21, 1
      %p78 = por %p76, %p77
      %p79 = scmp.ne.s32.totalorder %s71, %s74
      %p80 = scmp.eq.s32.totalorder %s21, 0
      %p81 = por %p79, %p80
      %p82 = scmp.ne.s32.totalorder %s71, %s74
      %p83 = scmp.eq.s32.totalorder %s26, 1
      %p84 = por %p82, %p83
      %p85 = scmp.ne.s32.totalorder %s74, %s75
      %p86 = scmp.eq.s32.totalorder %s26, 0
      %p87 = por %p85, %p86
      %p88 = scmp.ne.s32.totalorder %s74, %s75
      %p89 = scmp.eq.s32.totalorder %s27, 1
      %p90 = por %p88, %p89
      %p92 = scmp.ne.s32.totalorder %s75, %s91
      %p93 = scmp.eq.s32.totalorder %s27, 0
      %p94 = por %p92, %p93
      %s96 = sadd.s32 %s95, 1
      %p99 = scmp.eq.s32.totalorder %s21, 1
      %p100 = scmp.ne.s32.totalorder %s95, %s97
      %p101 = scmp.eq.s32.totalorder %s21, 0
      %p102 = por %p100, %p101
      %p103 = scmp.ne.s32.totalorder %s95, %s97
      %p104 = scmp.eq.s32.totalorder %s26, 1
      %p105 = por %p103, %p104
      %p106 = scmp.ne.s32.totalorder %s97, %s98
      %p107 = scmp.eq.s32.totalorder %s26, 0
      %p108 = por %p106, %p107
      %p109 = scmp.ne.s32.totalorder %s97, %s98
      %p110 = scmp.eq.s32.totalorder %s27, 1
      %p111 = por %p109, %p110
      %p113 = scmp.ne.s32.totalorder %s98, %s112
      %p114 = scmp.eq.s32.totalorder %s27, 0
      %p115 = por %p113, %p114
      %s117 = sadd.s32 %s116, 1
      %p120 = scmp.eq.s32.totalorder %s21, 1
      %p121 = scmp.ne.s32.totalorder %s116, %s118
      %p122 = scmp.eq.s32.totalorder %s21, 0
      %p123 = por %p121, %p122
      %p124 = scmp.ne.s32.totalorder %s116, %s118
      %p125 = scmp.eq.s32.totalorder %s26, 1
      %p126 = por %p124, %p125
      %p127 = scmp.ne.s32.totalorder %s118, %s119
      %p128 = scmp.eq.s32.totalorder %s26, 0
      %p129 = por %p127, %p128
      %p130 = scmp.ne.s32.totalorder %s118, %s119
      %p131 = scmp.eq.s32.totalorder %s27, 1
      %p132 = por %p130, %p131
      %p134 = scmp.ne.s32.totalorder %s119, %s133
      %p135 = scmp.eq.s32.totalorder %s27, 0
      %p136 = por %p134, %p135
      %s138 = sadd.s32 %s137, 1
      %p141 = scmp.eq.s32.totalorder %s21, 1
      %p142 = scmp.ne.s32.totalorder %s137, %s139
      %p143 = scmp.eq.s32.totalorder %s21, 0
      %p144 = por %p142, %p143
      %p145 = scmp.ne.s32.totalorder %s137, %s139
      %p146 = scmp.eq.s32.totalorder %s26, 1
      %p147 = por %p145, %p146
      %p148 = scmp.ne.s32.totalorder %s139, %s140
      %p149 = scmp.eq.s32.totalorder %s26, 0
      %p150 = por %p148, %p149
      %p151 = scmp.ne.s32.totalorder %s139, %s140
      %p152 = scmp.eq.s32.totalorder %s27, 1
      %p153 = por %p151, %p152
      %p155 = scmp.ne.s32.totalorder %s140, %s154
      %p156 = scmp.eq.s32.totalorder %s27, 0
      %p157 = por %p155, %p156
      %s159 = sadd.s32 %s158, 1
      %p162 = scmp.eq.s32.totalorder %s21, 1
      %p163 = scmp.ne.s32.totalorder %s158, %s160
      %p164 = scmp.eq.s32.totalorder %s21, 0
      %p165 = por %p163, %p164
      %p166 = scmp.ne.s32.totalorder %s158, %s160
      %p167 = scmp.eq.s32.totalorder %s26, 1
      %p168 = por %p166, %p167
      %p169 = scmp.ne.s32.totalorder %s160, %s161
      %p170 = scmp.eq.s32.totalorder %s26, 0
      %p171 = por %p169, %p170
      %p172 = scmp.ne.s32.totalorder %s160, %s161
      %p173 = scmp.eq.s32.totalorder %s27, 1
      %p174 = por %p172, %p173
      %p176 = scmp.ne.s32.totalorder %s161, %s175
      %p177 = scmp.eq.s32.totalorder %s27, 0
      %p178 = por %p176, %p177
      %s180 = sadd.s32 %s179, 1
      %p183 = scmp.eq.s32.totalorder %s21, 1
      %p184 = scmp.ne.s32.totalorder %s179, %s181
      %p185 = scmp.eq.s32.totalorder %s21, 0
      %p186 = por %p184, %p185
      %p187 = scmp.ne.s32.totalorder %s179, %s181
      %p188 = scmp.eq.s32.totalorder %s26, 1
      %p189 = por %p187, %p188
      %p190 = scmp.ne.s32.totalorder %s181, %s182
      %p191 = scmp.eq.s32.totalorder %s26, 0
      %p192 = por %p190, %p191
      %p193 = scmp.ne.s32.totalorder %s181, %s182
      %p194 = scmp.eq.s32.totalorder %s27, 1
      %p195 = por %p193, %p194
      %p197 = scmp.ne.s32.totalorder %s182, %s196
      %p198 = scmp.eq.s32.totalorder %s27, 0
      %p199 = por %p197, %p198
      %s201 = sadd.s32 %s200, 1
      %p204 = scmp.eq.s32.totalorder %s21, 1
      %p205 = scmp.ne.s32.totalorder %s200, %s202
      %p206 = scmp.eq.s32.totalorder %s21, 0
      %p207 = por %p205, %p206
      %p208 = scmp.ne.s32.totalorder %s200, %s202
      %p209 = scmp.eq.s32.totalorder %s26, 1
      %p210 = por %p208, %p209
      %p211 = scmp.ne.s32.totalorder %s202, %s203
      %p212 = scmp.eq.s32.totalorder %s26, 0
      %p213 = por %p211, %p212
      %p214 = scmp.ne.s32.totalorder %s202, %s203
      %p215 = scmp.eq.s32.totalorder %s27, 1
      %p216 = por %p214, %p215
      %p218 = scmp.ne.s32.totalorder %s203, %s217
      %p219 = scmp.eq.s32.totalorder %s27, 0
      %p220 = por %p218, %p219
      %s222 = sadd.s32 %s221, 1
      %p225 = scmp.eq.s32.totalorder %s21, 1
      %p226 = scmp.ne.s32.totalorder %s221, %s223
      %p227 = scmp.eq.s32.totalorder %s21, 0
      %p228 = por %p226, %p227
      %p229 = scmp.ne.s32.totalorder %s221, %s223
      %p230 = scmp.eq.s32.totalorder %s26, 1
      %p231 = por %p229, %p230
      %p232 = scmp.ne.s32.totalorder %s223, %s224
      %p233 = scmp.eq.s32.totalorder %s26, 0
      %p234 = por %p232, %p233
      %p235 = scmp.ne.s32.totalorder %s223, %s224
      %p236 = scmp.eq.s32.totalorder %s27, 1
      %p237 = por %p235, %p236
      %p239 = scmp.ne.s32.totalorder %s224, %s238
      %p240 = scmp.eq.s32.totalorder %s27, 0
      %p241 = por %p239, %p240
      %s242 = ssub.s32 %s29, %s36
      %s243 = ssub.s32 %s28, %s40
      %s244 = sor.u32 %s242, %s243
      %p245 = scmp.eq.s32.totalorder %s244, 0
      %s247 = sadd.s32 %s246, 1
      %s248 = scalar_select %p245, %s246, %s247
      %p251 = pneg %p245
      %p252 = scmp.eq.s32.totalorder %s21, 1
      %p253 = por %p251, %p252
      %p254 = scmp.ne.s32.totalorder %s246, %s249
      %p255 = scmp.eq.s32.totalorder %s21, 0
      %p256 = por %p254, %p255
      %p257 = scmp.ne.s32.totalorder %s246, %s249
      %p258 = scmp.eq.s32.totalorder %s26, 1
      %p259 = por %p257, %p258
      %p260 = scmp.ne.s32.totalorder %s249, %s250
      %p261 = scmp.eq.s32.totalorder %s26, 0
      %p262 = por %p260, %p261
      %p263 = scmp.ne.s32.totalorder %s249, %s250
      %p264 = scmp.eq.s32.totalorder %s27, 1
      %p265 = por %p263, %p264
      %p267 = scmp.ne.s32.totalorder %s250, %s266
      %p268 = scmp.eq.s32.totalorder %s27, 0
      %p269 = por %p267, %p268
      %s270 = ssub.s32 %s28, %s40
      %p271 = scmp.eq.s32.totalorder %s270, 0
      %s273 = sadd.s32 %s272, 1
      %s274 = scalar_select %p271, %s272, %s273
      %p277 = pneg %p271
      %p278 = scmp.eq.s32.totalorder %s21, 1
      %p279 = por %p277, %p278
      %p280 = scmp.ne.s32.totalorder %s272, %s275
      %p281 = scmp.eq.s32.totalorder %s21, 0
      %p282 = por %p280, %p281
      %p283 = scmp.ne.s32.totalorder %s272, %s275
      %p284 = scmp.eq.s32.totalorder %s26, 1
      %p285 = por %p283, %p284
      %p286 = scmp.ne.s32.totalorder %s275, %s276
      %p287 = scmp.eq.s32.totalorder %s26, 0
      %p288 = por %p286, %p287
      %p289 = scmp.ne.s32.totalorder %s275, %s276
      %p290 = scmp.eq.s32.totalorder %s27, 1
      %p291 = por %p289, %p290
      %p293 = scmp.ne.s32.totalorder %s276, %s292
      %p294 = scmp.eq.s32.totalorder %s27, 0
      %p295 = por %p293, %p294
      %s296 = ssub.s32 %s28, %s40
      %p297 = scmp.eq.s32.totalorder %s296, 0
      %s299 = sadd.s32 %s298, 1
      %s300 = scalar_select %p297, %s298, %s299
      %p303 = pneg %p297
      %p304 = scmp.eq.s32.totalorder %s21, 1
      %p305 = por %p303, %p304
      %p306 = scmp.ne.s32.totalorder %s298, %s301
      %p307 = scmp.eq.s32.totalorder %s21, 0
      %p308 = por %p306, %p307
      %p309 = scmp.ne.s32.totalorder %s298, %s301
      %p310 = scmp.eq.s32.totalorder %s26, 1
      %p311 = por %p309, %p310
      %p312 = scmp.ne.s32.totalorder %s301, %s302
      %p313 = scmp.eq.s32.totalorder %s26, 0
      %p314 = por %p312, %p313
      %p315 = scmp.ne.s32.totalorder %s301, %s302
      %p316 = scmp.eq.s32.totalorder %s27, 1
      %p317 = por %p315, %p316
      %p319 = scmp.ne.s32.totalorder %s302, %s318
      %p320 = scmp.eq.s32.totalorder %s27, 0
      %p321 = por %p319, %p320
      %p322 = scmp.le.s32.totalorder 1, %s21
      %p323 = scmp.lt.s32.totalorder %s21, 3
      %p324 = pnand %p322, %p323
      %p325 = pneg %p324
      // Predicated region
      $region9: #{decoder_forward.1} parent=5 // pred_check
        _
      $region10: #{decoder_forward.1} parent=5 // pred_check_branch
        %327 = sbr.rel (%p324) target = $region12
      $region11: #{decoder_forward.1} parent=5 // pred_region
        %s328 = ssub.s32 %s21, 1
        // Predicated region
        $region13: #{decoder_forward.1} parent=11 // pred_check
          %p329 = pneg %p59
        $region14: #{decoder_forward.1} parent=11 // pred_check_branch
          %331 = sbr.rel (%p329) target = $region16
        $region15: #{decoder_forward.1} parent=11 // pred_region
          %p332 = scmp.lt.s32.totalorder %s30, 0
          %s333 = scalar_select %p332, %s30, 0
          %s334 = smul.addr %s333, 8
          %s335 = scalar_lea.vmem %s0, %s334
        $region16: #{decoder_forward.1} parent=11 // pred_fallthru
          _
        // Predicated region
        $region17: #{decoder_forward.1} parent=11 // pred_check
          %p336 = pneg %p108
        $region18: #{decoder_forward.1} parent=11 // pred_check_branch
          %338 = sbr.rel (%p336) target = $region20
        $region19: #{decoder_forward.1} parent=11 // pred_region
          %s340 = ssub.s32 256, 256
          %341 = vsyncadd [#allocation6], %s340
          %s342 = sshll.u32 [#allocation5], 4
          %s343 = int_to_ptr.vmem [resolvable:$true] %s342
          %348 = dma.hbm_to_vmem [thread:$0]  %s2, 256, %s343, [#allocation6], 128, 128, 8
        $region20: #{decoder_forward.1} parent=11 // pred_fallthru
          _
        // Predicated region
        $region21: #{decoder_forward.1} parent=11 // pred_check
          %p349 = pneg %p129
        $region22: #{decoder_forward.1} parent=11 // pred_check_branch
          %351 = sbr.rel (%p349) target = $region24
        $region23: #{decoder_forward.1} parent=11 // pred_region
          %s353 = ssub.s32 16, 16
          %354 = vsyncadd [#allocation8], %s353
          %s356 = sshll.u32 [#allocation7], 4
          %s357 = int_to_ptr.vmem [resolvable:$true] %s356
          %359 = dma.hbm_to_vmem [thread:$0]  %s3, 16, %s357, [#allocation8]
        $region24: #{decoder_forward.1} parent=11 // pred_fallthru
          _
        // Predicated region
        $region25: #{decoder_forward.1} parent=11 // pred_check
          %p360 = pneg %p150
        $region26: #{decoder_forward.1} parent=11 // pred_check_branch
          %362 = sbr.rel (%p360) target = $region28
        $region27: #{decoder_forward.1} parent=11 // pred_region
          _
        $region28: #{decoder_forward.1} parent=11 // pred_fallthru
          _
        // Predicated region
        $region29: #{decoder_forward.1} parent=11 // pred_check
          %p363 = pneg %p171
        $region30: #{decoder_forward.1} parent=11 // pred_check_branch
          %365 = sbr.rel (%p363) target = $region32
        $region31: #{decoder_forward.1} parent=11 // pred_region
          %s367 = ssub.s32 16, 16
          %368 = vsyncadd [#allocation8], %s367
          %s370 = sshll.u32 [#allocation9], 4
          %s371 = int_to_ptr.vmem [resolvable:$true] %s370
          %373 = dma.hbm_to_vmem [thread:$0]  %s5, 16, %s371, [#allocation8]
        $region32: #{decoder_forward.1} parent=11 // pred_fallthru
          _
        // Predicated region
        $region33: #{decoder_forward.1} parent=11 // pred_check
          %p374 = pneg %p192
        $region34: #{decoder_forward.1} parent=11 // pred_check_branch
          %376 = sbr.rel (%p374) target = $region36
        $region35: #{decoder_forward.1} parent=11 // pred_region
          _
        $region36: #{decoder_forward.1} parent=11 // pred_fallthru
          _
        // Predicated region
        $region37: #{decoder_forward.1} parent=11 // pred_check
          %p377 = pneg %p213
        $region38: #{decoder_forward.1} parent=11 // pred_check_branch
          %379 = sbr.rel (%p377) target = $region40
        $region39: #{decoder_forward.1} parent=11 // pred_region
          _
        $region40: #{decoder_forward.1} parent=11 // pred_fallthru
          _
        // Predicated region
        $region41: #{decoder_forward.1} parent=11 // pred_check
          %p380 = pneg %p234
        $region42: #{decoder_forward.1} parent=11 // pred_check_branch
          %382 = sbr.rel (%p380) target = $region44
        $region43: #{decoder_forward.1} parent=11 // pred_region
          %s384 = ssub.s32 16, 16
          %385 = vsyncadd [#allocation11], %s384
          %s387 = sshll.u32 [#allocation10], 4
          %s388 = int_to_ptr.vmem [resolvable:$true] %s387
          %390 = dma.hbm_to_vmem [thread:$0]  %s8, 16, %s388, [#allocation11]
        $region44: #{decoder_forward.1} parent=11 // pred_fallthru
          _
      $region12: #{decoder_forward.1} parent=5 // pred_fallthru
        _
      %p391 = scmp.lt.s32.totalorder %s21, 2
      // Predicated region
      $region45: #{decoder_forward.1} parent=5 // pred_check
        %p392 = pneg %p391
      $region46: #{decoder_forward.1} parent=5 // pred_check_branch
        %394 = sbr.rel (%p392) target = $region48
      $region47: #{decoder_forward.1} parent=5 // pred_region
        // Predicated region
        $region49: #{decoder_forward.1} parent=47 // pred_check
          %p395 = pneg %p81
        $region50: #{decoder_forward.1} parent=47 // pred_check_branch
          %397 = sbr.rel (%p395) target = $region52
        $region51: #{decoder_forward.1} parent=47 // pred_region
          %s398 = smul.u32 4, %s29
          %p399 = scmp.lt.s32.totalorder %s398, 7
          %s400 = scalar_select %p399, %s398, 7
          %p401 = scmp.lt.s32.totalorder %s28, 0
          %s402 = scalar_select %p401, %s28, 0
          %s403 = sadd.s32 %s402, %s400
          %s404 = smul.addr %s403, 8
          %s405 = scalar_lea.vmem %s1, %s404
          %s406 = smul.u32 4, %s29
        $region52: #{decoder_forward.1} parent=47 // pred_fallthru
          _
      $region48: #{decoder_forward.1} parent=5 // pred_fallthru
        _
      %p407 = scmp.le.s32.totalorder 1, %s21
      %p408 = scmp.lt.s32.totalorder %s21, 3
      %p409 = pnand %p407, %p408
      %p410 = pneg %p409
      // Predicated region
      $region53: #{decoder_forward.1} parent=5 // pred_check
        _
      $region54: #{decoder_forward.1} parent=5 // pred_check_branch
        %412 = sbr.rel (%p409) target = $region56
      $region55: #{decoder_forward.1} parent=5 // pred_region
        %s413 = ssub.s32 %s21, 1
        // Predicated region
        $region57: #{decoder_forward.1} parent=55 // pred_check
          %p414 = pneg %p108
        $region58: #{decoder_forward.1} parent=55 // pred_check_branch
          %416 = sbr.rel (%p414) target = $region60
        $region59: #{decoder_forward.1} parent=55 // pred_region
          %417 = dma.done [#allocation6], 256
        $region60: #{decoder_forward.1} parent=55 // pred_fallthru
          _
        // Predicated region
        $region61: #{decoder_forward.1} parent=55 // pred_check
          %p418 = pneg %p129
        $region62: #{decoder_forward.1} parent=55 // pred_check_branch
          %420 = sbr.rel (%p418) target = $region64
        $region63: #{decoder_forward.1} parent=55 // pred_region
          %421 = dma.done [#allocation8], 16
        $region64: #{decoder_forward.1} parent=55 // pred_fallthru
          _
        // Predicated region
        $region65: #{decoder_forward.1} parent=55 // pred_check
          %p422 = pneg %p171
        $region66: #{decoder_forward.1} parent=55 // pred_check_branch
          %424 = sbr.rel (%p422) target = $region68
        $region67: #{decoder_forward.1} parent=55 // pred_region
          %425 = dma.done [#allocation8], 16
        $region68: #{decoder_forward.1} parent=55 // pred_fallthru
          _
        // Predicated region
        $region69: #{decoder_forward.1} parent=55 // pred_check
          %p426 = pneg %p234
        $region70: #{decoder_forward.1} parent=55 // pred_check_branch
          %428 = sbr.rel (%p426) target = $region72
        $region71: #{decoder_forward.1} parent=55 // pred_region
          %429 = dma.done [#allocation11], 16
        $region72: #{decoder_forward.1} parent=55 // pred_fallthru
          _
        %p430 = scmp.lt.s32.totalorder %s30, 0
        %s431 = scalar_select %p430, %s30, 0
        %s432 = smul.addr %s431, 8
        %s433 = scalar_lea.vmem %s0, %s432
        %p434 = pneg %p59
        %p435 = pneg %p56
        %s436 = smul.u32 4, %s31
        %p437 = scmp.lt.s32.totalorder %s436, 7
        %s438 = scalar_select %p437, %s436, 7
        %p439 = scmp.lt.s32.totalorder %s30, 0
        %s440 = scalar_select %p439, %s30, 0
        %s441 = sadd.s32 %s440, %s438
        %s442 = smul.addr %s441, 8
        %s443 = scalar_lea.vmem %s1, %s442
        %p444 = pneg %p87
        %p445 = pneg %p84
        %p446 = pneg %p108
        %p447 = pneg %p105
        %p448 = pneg %p129
        %p449 = pneg %p126
        %p450 = pneg %p150
        %p451 = pneg %p147
        %p452 = pneg %p171
        %p453 = pneg %p168
        %p454 = pneg %p192
        %p455 = pneg %p189
        %p456 = pneg %p213
        %p457 = pneg %p210
        %p458 = pneg %p234
        %p459 = pneg %p231
        %p460 = pneg %p262
        %p461 = pneg %p259
        %s462 = smul.u32 4, %s31
        %p463 = scmp.lt.s32.totalorder %s462, 7
        %s464 = scalar_select %p463, %s462, 7
        %p465 = scmp.lt.s32.totalorder %s30, 0
        %s466 = scalar_select %p465, %s30, 0
        %s467 = sadd.s32 %s466, %s464
        %s468 = smul.addr %s467, 8
        %s469 = scalar_lea.vmem %s9, %s468
        %p470 = pneg %p288
        %p471 = pneg %p285
        %p472 = scmp.lt.s32.totalorder %s30, 0
        %s473 = scalar_select %p472, %s30, 0
        %s474 = smul.addr %s473, 8
        %s475 = scalar_lea.vmem %s10, %s474
        %p476 = pneg %p314
        %p477 = pneg %p311
        %p478 = scmp.lt.s32.totalorder %s30, 0
        %s479 = scalar_select %p478, %s30, 0
        %s480 = smul.addr %s479, 8
        %s481 = scalar_lea.vmem %s11, %s480
        %p482 = scmp.lt.s32.totalorder %s30, 0
        %s483 = scalar_select %p482, %s30, 0
        %s484 = smul.addr %s483, 8
        %s485 = scalar_lea.vmem %s0, %s484
        %s486 = smul.u32 4, %s31
        %p487 = scmp.lt.s32.totalorder %s486, 7
        %s488 = scalar_select %p487, %s486, 7
        %p489 = scmp.lt.s32.totalorder %s30, 0
        %s490 = scalar_select %p489, %s30, 0
        %s491 = sadd.s32 %s490, %s488
        %s492 = smul.addr %s491, 8
        %s493 = scalar_lea.vmem %s1, %s492
        %s494 = smul.u32 4, %s31
        %s495 = smul.u32 4, %s31
        %p496 = scmp.lt.s32.totalorder %s495, 7
        %s497 = scalar_select %p496, %s495, 7
        %p498 = scmp.lt.s32.totalorder %s30, 0
        %s499 = scalar_select %p498, %s30, 0
        %s500 = sadd.s32 %s499, %s497
        %s501 = smul.addr %s500, 8
        %s502 = scalar_lea.vmem %s9, %s501
        %s503 = smul.u32 4, %s31
        %p504 = scmp.lt.s32.totalorder %s30, 0
        %s505 = scalar_select %p504, %s30, 0
        %s506 = smul.addr %s505, 8
        %s507 = scalar_lea.vmem %s10, %s506
        %p508 = scmp.lt.s32.totalorder %s30, 0
        %s509 = scalar_select %p508, %s30, 0
        %s510 = smul.addr %s509, 8
        %s511 = scalar_lea.vmem %s11, %s510
        %p512 = scmp.eq.s32.totalorder %s31, 0
        // Predicated region
        $region73: #{decoder_forward.1} parent=55 // pred_check
          %p513 = pneg %p512
        $region74: #{decoder_forward.1} parent=55 // pred_check_branch
          %515 = sbr.rel (%p513) target = $region76
        $region75: #{decoder_forward.1} parent=55 // pred_region
          %v516 = vld [vmem:[%s485] sm:$0xff]
          %v517 = vld [vmem:[#allocation5] sm:$0xff]
          %v518 = vld [vmem:[#allocation5 + $0x8] sm:$0xff]
          %v519 = vld [vmem:[#allocation7] sm:$0x1]
          %v521 = vlaneseq
          %v522 = vshrl.u32 %v521, 7
          %v523 = vsub.s32 0, %v522
          %v524 = vrot.slane %v519, %v523
          %vm526 = vcmask 130048
          %v528 = vsel %vm526, %v516, 0
          %530 = vmatprep.subr.mxu0 0.0
          %531 = vmatpush1.msra.mxu0 0.0
          %532 = vmatprep.subr.mxu0 0.0
          %533 = vmatpush1.msra.mxu0 0.0
          %534 = vmatprep.subr.mxu0 0.0
          %535 = vmatpush1.msra.mxu0 0.0
          %536 = vmatprep.subr.mxu0 0.0
          %537 = vmatpush1.msra.mxu0 0.0
          %538 = vmatprep.subr.mxu0 0.0
          %539 = vmatpush1.msra.mxu0 0.0
          %540 = vmatprep.subr.mxu0 0.0
          %541 = vmatpush1.msra.mxu0 0.0
          %542 = vmatprep.subr.mxu0 0.0
          %543 = vmatpush1.msra.mxu0 0.0
          %544 = vmatprep.subr.mxu0 0.0
          %545 = vmatpush1.msra.mxu0 0.0
          %546 = vmatprep.subr.mxu0 0.0
          %547 = vmatpush1.msra.mxu0 0.0
          %548 = vmatprep.subr.mxu0 0.0
          %549 = vmatpush1.msra.mxu0 0.0
          %550 = vmatprep.subr.mxu0 0.0
          %551 = vmatpush1.msra.mxu0 0.0
          %552 = vmatprep.subr.mxu0 0.0
          %553 = vmatpush1.msra.mxu0 0.0
          %554 = vmatprep.subr.mxu0 0.0
          %555 = vmatpush1.msra.mxu0 0.0
          %556 = vmatprep.subr.mxu0 0.0
          %557 = vmatpush1.msra.mxu0 0.0
          %558 = vmatprep.subr.mxu0 0.0
          %559 = vmatpush1.msra.mxu0 %v518
          %560 = vmatprep.subr.mxu0 0.0
          %561 = vmatpush1.msra.mxu0 %v517
          %562 = vmatprep.subr.mxu0 0.0
          %563 = vmatpush2.msra.mxu0 0.0
          %564 = vmatprep.subr.mxu0 0.0
          %565 = vmatpush2.msra.mxu0 0.0
          %566 = vmatprep.subr.mxu0 0.0
          %567 = vmatpush2.msra.mxu0 0.0
          %568 = vmatprep.subr.mxu0 0.0
          %569 = vmatpush2.msra.mxu0 0.0
          %570 = vmatprep.subr.mxu0 0.0
          %571 = vmatpush2.msra.mxu0 0.0
          %572 = vmatprep.subr.mxu0 0.0
          %573 = vmatpush2.msra.mxu0 0.0
          %574 = vmatprep.subr.mxu0 0.0
          %575 = vmatpush2.msra.mxu0 0.0
          %576 = vmatprep.subr.mxu0 0.0
          %577 = vmatpush2.msra.mxu0 0.0
          %578 = vmatprep.subr.mxu0 0.0
          %579 = vmatpush2.msra.mxu0 0.0
          %580 = vmatprep.subr.mxu0 0.0
          %581 = vmatpush2.msra.mxu0 0.0
          %582 = vmatprep.subr.mxu0 0.0
          %583 = vmatpush2.msra.mxu0 0.0
          %584 = vmatprep.subr.mxu0 0.0
          %585 = vmatpush2.msra.mxu0 0.0
          %586 = vmatprep.subr.mxu0 0.0
          %587 = vmatpush2.msra.mxu0 0.0
          %588 = vmatprep.subr.mxu0 0.0
          %589 = vmatpush2.msra.mxu0 0.0
          %590 = vmatprep.subr.mxu0 0.0
          %591 = vmatpush2.msra.mxu0 0.0
          %592 = vmatprep.subr.mxu0 0.0
          %593 = vmatpush2.msra.mxu0 0.0
          %594 = vmatprep.mubr.f32.mxu0 0.0
          %595 = vmatmul.mubr.f32.gmra.mxu0 %v528
          %v596 = vpop.f32.mrf.mxu0
          %v597 = vadd.f32 %v524, %v596
          %v598 = vpop.f32.mrf.mxu0
          %599 = vdwg.mxu0
          %v600 = vtanh.pop %v597
          %vm601 = vcmask 261120
          %602 = vst.msk [vmem:[#allocation2] sm:$0xff] %vm601, %v600
          %604 = vrot.lane.b32.xlu0 %v600, 96
          %v605 = vpop.permute.xlu0 %604
          %607 = vst.msk [vmem:[#allocation3] sm:$0xff] %vm601, %v605
        $region76: #{decoder_forward.1} parent=55 // pred_fallthru
          _
        %v608 = vld [vmem:[%s6] sm:$0xff]
        %v609 = vld [vmem:[%s6 + $0x8] sm:$0xff]
        %v610 = vld [vmem:[%s6 + $0x10] sm:$0xff]
        %v611 = vld [vmem:[%s6 + $0x18] sm:$0xff]
        %v612 = vld [vmem:[%s493] sm:$0xff]
        %v613 = vld [vmem:[%s493 + $0x8] sm:$0xff]
        %v614 = vld [vmem:[%s493 + $0x10] sm:$0xff]
        %v615 = vld [vmem:[%s493 + $0x18] sm:$0xff]
        %v616 = vld [vmem:[%s4] sm:$0xff]
        %v617 = vld [vmem:[%s4 + $0x8] sm:$0xff]
        %v618 = vld [vmem:[%s4 + $0x10] sm:$0x1f]
        %v619 = vld [vmem:[#allocation9] sm:$0x1]
        %v621 = vlaneseq
        %v622 = vshrl.u32 %v621, 7
        %v623 = vsub.s32 0, %v622
        %v624 = vrot.slane %v619, %v623
        %vm626 = vcmask 171008
        %v628 = vsel %vm626, %v612, 0
        %v631 = vsel %vm626, %v613, 0
        %v634 = vsel %vm626, %v614, 0
        %v637 = vsel %vm626, %v615, 0
        %vm639 = vcmask 1044480
        %v641 = vsel %vm639, %v618, 0
        %643 = vmatprep.subr.mxu0 0.0
        %644 = vmatpush1.msra.mxu0 0.0
        %645 = vmatprep.subr.mxu0 0.0
        %646 = vmatpush1.msra.mxu0 0.0
        %647 = vmatprep.subr.mxu0 0.0
        %648 = vmatpush1.msra.mxu0 0.0
        %649 = vmatprep.subr.mxu0 0.0
        %650 = vmatpush1.msra.mxu0 0.0
        %651 = vmatprep.subr.mxu0 0.0
        %652 = vmatpush1.msra.mxu0 0.0
        %653 = vmatprep.subr.mxu0 0.0
        %654 = vmatpush1.msra.mxu0 0.0
        %655 = vmatprep.subr.mxu0 0.0
        %656 = vmatpush1.msra.mxu0 0.0
        %657 = vmatprep.subr.mxu0 0.0
        %658 = vmatpush1.msra.mxu0 0.0
        %659 = vmatprep.subr.mxu0 0.0
        %660 = vmatpush1.msra.mxu0 0.0
        %661 = vmatprep.subr.mxu0 0.0
        %662 = vmatpush1.msra.mxu0 0.0
        %663 = vmatprep.subr.mxu0 0.0
        %664 = vmatpush1.msra.mxu0 0.0
        %665 = vmatprep.subr.mxu0 0.0
        %666 = vmatpush1.msra.mxu0 0.0
        %667 = vmatprep.subr.mxu0 0.0
        %668 = vmatpush1.msra.mxu0 0.0
        %669 = vmatprep.subr.mxu0 0.0
        %670 = vmatpush1.msra.mxu0 %v641
        %671 = vmatprep.subr.mxu0 0.0
        %672 = vmatpush1.msra.mxu0 %v617
        %673 = vmatprep.subr.mxu0 0.0
        %674 = vmatpush1.msra.mxu0 %v616
        %675 = vmatprep.subr.mxu0 0.0
        %676 = vmatpush2.msra.mxu0 0.0
        %677 = vmatprep.subr.mxu0 0.0
        %678 = vmatpush2.msra.mxu0 0.0
        %679 = vmatprep.subr.mxu0 0.0
        %680 = vmatpush2.msra.mxu0 0.0
        %681 = vmatprep.subr.mxu0 0.0
        %682 = vmatpush2.msra.mxu0 0.0
        %683 = vmatprep.subr.mxu0 0.0
        %684 = vmatpush2.msra.mxu0 0.0
        %685 = vmatprep.subr.mxu0 0.0
        %686 = vmatpush2.msra.mxu0 0.0
        %687 = vmatprep.subr.mxu0 0.0
        %688 = vmatpush2.msra.mxu0 0.0
        %689 = vmatprep.subr.mxu0 0.0
        %690 = vmatpush2.msra.mxu0 0.0
        %691 = vmatprep.subr.mxu0 0.0
        %692 = vmatpush2.msra.mxu0 0.0
        %693 = vmatprep.subr.mxu0 0.0
        %694 = vmatpush2.msra.mxu0 0.0
        %695 = vmatprep.subr.mxu0 0.0
        %696 = vmatpush2.msra.mxu0 0.0
        %697 = vmatprep.subr.mxu0 0.0
        %698 = vmatpush2.msra.mxu0 0.0
        %699 = vmatprep.subr.mxu0 0.0
        %700 = vmatpush2.msra.mxu0 0.0
        %701 = vmatprep.subr.mxu0 0.0
        %702 = vmatpush2.msra.mxu0 0.0
        %703 = vmatprep.subr.mxu0 0.0
        %704 = vmatpush2.msra.mxu0 0.0
        %705 = vmatprep.subr.mxu0 0.0
        %706 = vmatpush2.msra.mxu0 0.0
        %707 = vmatprep.mubr.f32.mxu0 0.0
        %708 = vmatmul.mubr.f32.gmra.mxu0 %v628
        %v709 = vpop.f32.mrf.mxu0
        %v710 = vadd.f32 %v624, %v709
        %v711 = vpop.f32.mrf.mxu0
        %712 = vmatprep.mubr.f32.mxu0 0.0
        %713 = vmatmul.mubr.f32.gmra.mxu0 %v631
        %v714 = vpop.f32.mrf.mxu0
        %v715 = vadd.f32 %v624, %v714
        %v716 = vpop.f32.mrf.mxu0
        %717 = vmatprep.mubr.f32.mxu0 0.0
        %718 = vmatmul.mubr.f32.gmra.mxu0 %v634
        %v719 = vpop.f32.mrf.mxu0
        %v720 = vadd.f32 %v624, %v719
        %v721 = vpop.f32.mrf.mxu0
        %722 = vmatprep.mubr.f32.mxu0 0.0
        %723 = vmatmul.mubr.f32.gmra.mxu0 %v637
        %v724 = vpop.f32.mrf.mxu0
        %v725 = vadd.f32 %v624, %v724
        %v726 = vpop.f32.mrf.mxu0
        %727 = vdwg.mxu0
        %v728 = vld [vmem:[#allocation2] sm:$0xff]
        %v729 = vld [vmem:[#allocation3] sm:$0xff]
        %vm730 = vcmask 261120
        %v732 = vsel %vm730, %v728, 0
        %734 = vmatprep.subr.mxu0 0.0
        %735 = vmatpush1.msra.mxu0 0.0
        %736 = vmatprep.subr.mxu0 0.0
        %737 = vmatpush1.msra.mxu0 0.0
        %738 = vmatprep.subr.mxu0 0.0
        %739 = vmatpush1.msra.mxu0 0.0
        %740 = vmatprep.subr.mxu0 0.0
        %741 = vmatpush1.msra.mxu0 0.0
        %742 = vmatprep.subr.mxu0 0.0
        %743 = vmatpush1.msra.mxu0 0.0
        %744 = vmatprep.subr.mxu0 0.0
        %745 = vmatpush1.msra.mxu0 0.0
        %746 = vmatprep.subr.mxu0 0.0
        %747 = vmatpush1.msra.mxu0 0.0
        %748 = vmatprep.subr.mxu0 0.0
        %749 = vmatpush1.msra.mxu0 0.0
        %750 = vmatprep.subr.mxu0 0.0
        %751 = vmatpush1.msra.mxu0 0.0
        %752 = vmatprep.subr.mxu0 0.0
        %753 = vmatpush1.msra.mxu0 0.0
        %754 = vmatprep.subr.mxu0 0.0
        %755 = vmatpush1.msra.mxu0 0.0
        %756 = vmatprep.subr.mxu0 0.0
        %757 = vmatpush1.msra.mxu0 0.0
        %758 = vmatprep.subr.mxu0 0.0
        %759 = vmatpush1.msra.mxu0 %v611
        %760 = vmatprep.subr.mxu0 0.0
        %761 = vmatpush1.msra.mxu0 %v610
        %762 = vmatprep.subr.mxu0 0.0
        %763 = vmatpush1.msra.mxu0 %v609
        %764 = vmatprep.subr.mxu0 0.0
        %765 = vmatpush1.msra.mxu0 %v608
        %766 = vmatprep.subr.mxu0 0.0
        %767 = vmatpush2.msra.mxu0 0.0
        %768 = vmatprep.subr.mxu0 0.0
        %769 = vmatpush2.msra.mxu0 0.0
        %770 = vmatprep.subr.mxu0 0.0
        %771 = vmatpush2.msra.mxu0 0.0
        %772 = vmatprep.subr.mxu0 0.0
        %773 = vmatpush2.msra.mxu0 0.0
        %774 = vmatprep.subr.mxu0 0.0
        %775 = vmatpush2.msra.mxu0 0.0
        %776 = vmatprep.subr.mxu0 0.0
        %777 = vmatpush2.msra.mxu0 0.0
        %778 = vmatprep.subr.mxu0 0.0
        %779 = vmatpush2.msra.mxu0 0.0
        %780 = vmatprep.subr.mxu0 0.0
        %781 = vmatpush2.msra.mxu0 0.0
        %782 = vmatprep.subr.mxu0 0.0
        %783 = vmatpush2.msra.mxu0 0.0
        %784 = vmatprep.subr.mxu0 0.0
        %785 = vmatpush2.msra.mxu0 0.0
        %786 = vmatprep.subr.mxu0 0.0
        %787 = vmatpush2.msra.mxu0 0.0
        %788 = vmatprep.subr.mxu0 0.0
        %789 = vmatpush2.msra.mxu0 0.0
        %790 = vmatprep.subr.mxu0 0.0
        %791 = vmatpush2.msra.mxu0 0.0
        %792 = vmatprep.subr.mxu0 0.0
        %793 = vmatpush2.msra.mxu0 0.0
        %794 = vmatprep.subr.mxu0 0.0
        %795 = vmatpush2.msra.mxu0 0.0
        %796 = vmatprep.subr.mxu0 0.0
        %797 = vmatpush2.msra.mxu0 0.0
        %798 = vmatprep.mubr.f32.mxu0 0.0
        %799 = vmatmul.mubr.f32.gmra.mxu0 %v732
        %v800 = vpop.f32.mrf.mxu0
        %v801 = vadd.f32 0.0, %v800
        %v802 = vpop.f32.mrf.mxu0
        %803 = vdwg.mxu0
        %v804 = vadd.f32 %v710, %v801
        %v805 = vmul.f32 %v804, 0.5
        %v806 = vtanh.pop %v805
        %v807 = vmul.f32 %v806, 0.5
        %v808 = vadd.f32 %v807, 0.5
        %v809 = vtanh.pop %v804
        %811 = vrot.lane.b32.xlu0 %v729, 32
        %v812 = vpop.permute.xlu0 %811
        %v814 = vmul.f32 %v808, %v812
        %816 = vrot.lane.b32.xlu0 %v809, 32
        %v817 = vpop.permute.xlu0 %816
        %v819 = vmul.f32 %v808, %v817
        %821 = vrot.lane.b32.xlu0 %v819, 32
        %v822 = vpop.permute.xlu0 %821
        %v824 = vadd.f32 %v814, %v822
        %v825 = vtanh.pop %v824
        %827 = vrot.lane.b32.xlu0 %v825, 32
        %v828 = vpop.permute.xlu0 %827
        %v830 = vmul.f32 %v808, %v828
        %832 = vrot.lane.b32.xlu0 %v830, 64
        %v833 = vpop.permute.xlu0 %832
        %835 = vst.msk [vmem:[#allocation4] sm:$0xff] %vm730, %v833
        %v836 = vsel %vm730, %v833, 0
        %838 = vmatprep.subr.mxu0 0.0
        %839 = vmatpush1.msra.mxu0 0.0
        %840 = vmatprep.subr.mxu0 0.0
        %841 = vmatpush1.msra.mxu0 0.0
        %842 = vmatprep.subr.mxu0 0.0
        %843 = vmatpush1.msra.mxu0 0.0
        %844 = vmatprep.subr.mxu0 0.0
        %845 = vmatpush1.msra.mxu0 0.0
        %846 = vmatprep.subr.mxu0 0.0
        %847 = vmatpush1.msra.mxu0 0.0
        %848 = vmatprep.subr.mxu0 0.0
        %849 = vmatpush1.msra.mxu0 0.0
        %850 = vmatprep.subr.mxu0 0.0
        %851 = vmatpush1.msra.mxu0 0.0
        %852 = vmatprep.subr.mxu0 0.0
        %853 = vmatpush1.msra.mxu0 0.0
        %854 = vmatprep.subr.mxu0 0.0
        %855 = vmatpush1.msra.mxu0 0.0
        %856 = vmatprep.subr.mxu0 0.0
        %857 = vmatpush1.msra.mxu0 0.0
        %858 = vmatprep.subr.mxu0 0.0
        %859 = vmatpush1.msra.mxu0 0.0
        %860 = vmatprep.subr.mxu0 0.0
        %861 = vmatpush1.msra.mxu0 0.0
        %862 = vmatprep.subr.mxu0 0.0
        %863 = vmatpush1.msra.mxu0 %v611
        %864 = vmatprep.subr.mxu0 0.0
        %865 = vmatpush1.msra.mxu0 %v610
        %866 = vmatprep.subr.mxu0 0.0
        %867 = vmatpush1.msra.mxu0 %v609
        %868 = vmatprep.subr.mxu0 0.0
        %869 = vmatpush1.msra.mxu0 %v608
        %870 = vmatprep.subr.mxu0 0.0
        %871 = vmatpush2.msra.mxu0 0.0
        %872 = vmatprep.subr.mxu0 0.0
        %873 = vmatpush2.msra.mxu0 0.0
        %874 = vmatprep.subr.mxu0 0.0
        %875 = vmatpush2.msra.mxu0 0.0
        %876 = vmatprep.subr.mxu0 0.0
        %877 = vmatpush2.msra.mxu0 0.0
        %878 = vmatprep.subr.mxu0 0.0
        %879 = vmatpush2.msra.mxu0 0.0
        %880 = vmatprep.subr.mxu0 0.0
        %881 = vmatpush2.msra.mxu0 0.0
        %882 = vmatprep.subr.mxu0 0.0
        %883 = vmatpush2.msra.mxu0 0.0
        %884 = vmatprep.subr.mxu0 0.0
        %885 = vmatpush2.msra.mxu0 0.0
        %886 = vmatprep.subr.mxu0 0.0
        %887 = vmatpush2.msra.mxu0 0.0
        %888 = vmatprep.subr.mxu0 0.0
        %889 = vmatpush2.msra.mxu0 0.0
        %890 = vmatprep.subr.mxu0 0.0
        %891 = vmatpush2.msra.mxu0 0.0
        %892 = vmatprep.subr.mxu0 0.0
        %893 = vmatpush2.msra.mxu0 0.0
        %894 = vmatprep.subr.mxu0 0.0
        %895 = vmatpush2.msra.mxu0 0.0
        %896 = vmatprep.subr.mxu0 0.0
        %897 = vmatpush2.msra.mxu0 0.0
        %898 = vmatprep.subr.mxu0 0.0
        %899 = vmatpush2.msra.mxu0 0.0
        %900 = vmatprep.subr.mxu0 0.0
        %901 = vmatpush2.msra.mxu0 0.0
        %902 = vmatprep.mubr.f32.mxu0 0.0
        %903 = vmatmul.mubr.f32.gmra.mxu0 %v836
        %v904 = vpop.f32.mrf.mxu0
        %v905 = vadd.f32 0.0, %v904
        %v906 = vpop.f32.mrf.mxu0
        %907 = vdwg.mxu0
        %v908 = vadd.f32 %v715, %v905
        %v909 = vmul.f32 %v908, 0.5
        %v910 = vtanh.pop %v909
        %v911 = vmul.f32 %v910, 0.5
        %v912 = vadd.f32 %v911, 0.5
        %v913 = vtanh.pop %v908
        %v914 = vmul.f32 %v912, %v824
        %916 = vrot.lane.b32.xlu0 %v913, 32
        %v917 = vpop.permute.xlu0 %916
        %v919 = vmul.f32 %v912, %v917
        %921 = vrot.lane.b32.xlu0 %v919, 32
        %v922 = vpop.permute.xlu0 %921
        %v924 = vadd.f32 %v914, %v922
        %v925 = vtanh.pop %v924
        %927 = vrot.lane.b32.xlu0 %v925, 32
        %v928 = vpop.permute.xlu0 %927
        %v930 = vmul.f32 %v912, %v928
        %932 = vrot.lane.b32.xlu0 %v930, 64
        %v933 = vpop.permute.xlu0 %932
        %935 = vst.msk [vmem:[#allocation4 + $0x8] sm:$0xff] %vm730, %v933
        %v936 = vsel %vm730, %v933, 0
        %938 = vmatprep.subr.mxu0 0.0
        %939 = vmatpush1.msra.mxu0 0.0
        %940 = vmatprep.subr.mxu0 0.0
        %941 = vmatpush1.msra.mxu0 0.0
        %942 = vmatprep.subr.mxu0 0.0
        %943 = vmatpush1.msra.mxu0 0.0
        %944 = vmatprep.subr.mxu0 0.0
        %945 = vmatpush1.msra.mxu0 0.0
        %946 = vmatprep.subr.mxu0 0.0
        %947 = vmatpush1.msra.mxu0 0.0
        %948 = vmatprep.subr.mxu0 0.0
        %949 = vmatpush1.msra.mxu0 0.0
        %950 = vmatprep.subr.mxu0 0.0
        %951 = vmatpush1.msra.mxu0 0.0
        %952 = vmatprep.subr.mxu0 0.0
        %953 = vmatpush1.msra.mxu0 0.0
        %954 = vmatprep.subr.mxu0 0.0
        %955 = vmatpush1.msra.mxu0 0.0
        %956 = vmatprep.subr.mxu0 0.0
        %957 = vmatpush1.msra.mxu0 0.0
        %958 = vmatprep.subr.mxu0 0.0
        %959 = vmatpush1.msra.mxu0 0.0
        %960 = vmatprep.subr.mxu0 0.0
        %961 = vmatpush1.msra.mxu0 0.0
        %962 = vmatprep.subr.mxu0 0.0
        %963 = vmatpush1.msra.mxu0 %v611
        %964 = vmatprep.subr.mxu0 0.0
        %965 = vmatpush1.msra.mxu0 %v610
        %966 = vmatprep.subr.mxu0 0.0
        %967 = vmatpush1.msra.mxu0 %v609
        %968 = vmatprep.subr.mxu0 0.0
        %969 = vmatpush1.msra.mxu0 %v608
        %970 = vmatprep.subr.mxu0 0.0
        %971 = vmatpush2.msra.mxu0 0.0
        %972 = vmatprep.subr.mxu0 0.0
        %973 = vmatpush2.msra.mxu0 0.0
        %974 = vmatprep.subr.mxu0 0.0
        %975 = vmatpush2.msra.mxu0 0.0
        %976 = vmatprep.subr.mxu0 0.0
        %977 = vmatpush2.msra.mxu0 0.0
        %978 = vmatprep.subr.mxu0 0.0
        %979 = vmatpush2.msra.mxu0 0.0
        %980 = vmatprep.subr.mxu0 0.0
        %981 = vmatpush2.msra.mxu0 0.0
        %982 = vmatprep.subr.mxu0 0.0
        %983 = vmatpush2.msra.mxu0 0.0
        %984 = vmatprep.subr.mxu0 0.0
        %985 = vmatpush2.msra.mxu0 0.0
        %986 = vmatprep.subr.mxu0 0.0
        %987 = vmatpush2.msra.mxu0 0.0
        %988 = vmatprep.subr.mxu0 0.0
        %989 = vmatpush2.msra.mxu0 0.0
        %990 = vmatprep.subr.mxu0 0.0
        %991 = vmatpush2.msra.mxu0 0.0
        %992 = vmatprep.subr.mxu0 0.0
        %993 = vmatpush2.msra.mxu0 0.0
        %994 = vmatprep.subr.mxu0 0.0
        %995 = vmatpush2.msra.mxu0 0.0
        %996 = vmatprep.subr.mxu0 0.0
        %997 = vmatpush2.msra.mxu0 0.0
        %998 = vmatprep.subr.mxu0 0.0
        %999 = vmatpush2.msra.mxu0 0.0
        %1000 = vmatprep.subr.mxu0 0.0
        %1001 = vmatpush2.msra.mxu0 0.0
        %1002 = vmatprep.mubr.f32.mxu0 0.0
        %1003 = vmatmul.mubr.f32.gmra.mxu0 %v936
        %v1004 = vpop.f32.mrf.mxu0
        %v1005 = vadd.f32 0.0, %v1004
        %v1006 = vpop.f32.mrf.mxu0
        %1007 = vdwg.mxu0
        %v1008 = vadd.f32 %v720, %v1005
        %v1009 = vmul.f32 %v1008, 0.5
        %v1010 = vtanh.pop %v1009
        %v1011 = vmul.f32 %v1010, 0.5
        %v1012 = vadd.f32 %v1011, 0.5
        %v1013 = vtanh.pop %v1008
        %v1014 = vmul.f32 %v1012, %v924
        %1016 = vrot.lane.b32.xlu0 %v1013, 32
        %v1017 = vpop.permute.xlu0 %1016
        %v1019 = vmul.f32 %v1012, %v1017
        %1021 = vrot.lane.b32.xlu0 %v1019, 32
        %v1022 = vpop.permute.xlu0 %1021
        %v1024 = vadd.f32 %v1014, %v1022
        %v1025 = vtanh.pop %v1024
        %1027 = vrot.lane.b32.xlu0 %v1025, 32
        %v1028 = vpop.permute.xlu0 %1027
        %v1030 = vmul.f32 %v1012, %v1028
        %1032 = vrot.lane.b32.xlu0 %v1030, 64
        %v1033 = vpop.permute.xlu0 %1032
        %1035 = vst.msk [vmem:[#allocation4 + $0x10] sm:$0xff] %vm730, %v1033
        %v1036 = vsel %vm730, %v1033, 0
        %1038 = vmatprep.subr.mxu0 0.0
        %1039 = vmatpush1.msra.mxu0 0.0
        %1040 = vmatprep.subr.mxu0 0.0
        %1041 = vmatpush1.msra.mxu0 0.0
        %1042 = vmatprep.subr.mxu0 0.0
        %1043 = vmatpush1.msra.mxu0 0.0
        %1044 = vmatprep.subr.mxu0 0.0
        %1045 = vmatpush1.msra.mxu0 0.0
        %1046 = vmatprep.subr.mxu0 0.0
        %1047 = vmatpush1.msra.mxu0 0.0
        %1048 = vmatprep.subr.mxu0 0.0
        %1049 = vmatpush1.msra.mxu0 0.0
        %1050 = vmatprep.subr.mxu0 0.0
        %1051 = vmatpush1.msra.mxu0 0.0
        %1052 = vmatprep.subr.mxu0 0.0
        %1053 = vmatpush1.msra.mxu0 0.0
        %1054 = vmatprep.subr.mxu0 0.0
        %1055 = vmatpush1.msra.mxu0 0.0
        %1056 = vmatprep.subr.mxu0 0.0
        %1057 = vmatpush1.msra.mxu0 0.0
        %1058 = vmatprep.subr.mxu0 0.0
        %1059 = vmatpush1.msra.mxu0 0.0
        %1060 = vmatprep.subr.mxu0 0.0
        %1061 = vmatpush1.msra.mxu0 0.0
        %1062 = vmatprep.subr.mxu0 0.0
        %1063 = vmatpush1.msra.mxu0 %v611
        %1064 = vmatprep.subr.mxu0 0.0
        %1065 = vmatpush1.msra.mxu0 %v610
        %1066 = vmatprep.subr.mxu0 0.0
        %1067 = vmatpush1.msra.mxu0 %v609
        %1068 = vmatprep.subr.mxu0 0.0
        %1069 = vmatpush1.msra.mxu0 %v608
        %1070 = vmatprep.subr.mxu0 0.0
        %1071 = vmatpush2.msra.mxu0 0.0
        %1072 = vmatprep.subr.mxu0 0.0
        %1073 = vmatpush2.msra.mxu0 0.0
        %1074 = vmatprep.subr.mxu0 0.0
        %1075 = vmatpush2.msra.mxu0 0.0
        %1076 = vmatprep.subr.mxu0 0.0
        %1077 = vmatpush2.msra.mxu0 0.0
        %1078 = vmatprep.subr.mxu0 0.0
        %1079 = vmatpush2.msra.mxu0 0.0
        %1080 = vmatprep.subr.mxu0 0.0
        %1081 = vmatpush2.msra.mxu0 0.0
        %1082 = vmatprep.subr.mxu0 0.0
        %1083 = vmatpush2.msra.mxu0 0.0
        %1084 = vmatprep.subr.mxu0 0.0
        %1085 = vmatpush2.msra.mxu0 0.0
        %1086 = vmatprep.subr.mxu0 0.0
        %1087 = vmatpush2.msra.mxu0 0.0
        %1088 = vmatprep.subr.mxu0 0.0
        %1089 = vmatpush2.msra.mxu0 0.0
        %1090 = vmatprep.subr.mxu0 0.0
        %1091 = vmatpush2.msra.mxu0 0.0
        %1092 = vmatprep.subr.mxu0 0.0
        %1093 = vmatpush2.msra.mxu0 0.0
        %1094 = vmatprep.subr.mxu0 0.0
        %1095 = vmatpush2.msra.mxu0 0.0
        %1096 = vmatprep.subr.mxu0 0.0
        %1097 = vmatpush2.msra.mxu0 0.0
        %1098 = vmatprep.subr.mxu0 0.0
        %1099 = vmatpush2.msra.mxu0 0.0
        %1100 = vmatprep.subr.mxu0 0.0
        %1101 = vmatpush2.msra.mxu0 0.0
        %1102 = vmatprep.mubr.f32.mxu0 0.0
        %1103 = vmatmul.mubr.f32.gmra.mxu0 %v1036
        %v1104 = vpop.f32.mrf.mxu0
        %v1105 = vadd.f32 0.0, %v1104
        %v1106 = vpop.f32.mrf.mxu0
        %1107 = vdwg.mxu0
        %v1108 = vadd.f32 %v725, %v1105
        %v1109 = vmul.f32 %v1108, 0.5
        %v1110 = vtanh.pop %v1109
        %v1111 = vmul.f32 %v1110, 0.5
        %v1112 = vadd.f32 %v1111, 0.5
        %v1113 = vtanh.pop %v1108
        %v1114 = vmul.f32 %v1112, %v1024
        %1116 = vrot.lane.b32.xlu0 %v1113, 32
        %v1117 = vpop.permute.xlu0 %1116
        %v1119 = vmul.f32 %v1112, %v1117
        %1121 = vrot.lane.b32.xlu0 %v1119, 32
        %v1122 = vpop.permute.xlu0 %1121
        %v1124 = vadd.f32 %v1114, %v1122
        %v1125 = vtanh.pop %v1124
        %1127 = vrot.lane.b32.xlu0 %v1125, 32
        %v1128 = vpop.permute.xlu0 %1127
        %v1130 = vmul.f32 %v1112, %v1128
        %1132 = vrot.lane.b32.xlu0 %v1130, 64
        %v1133 = vpop.permute.xlu0 %1132
        %1135 = vst.msk [vmem:[#allocation4 + $0x18] sm:$0xff] %vm730, %v1133
        %1136 = vst.msk [vmem:[#allocation2] sm:$0xff] %vm730, %v1133
        %1138 = vrot.lane.b32.xlu0 %v1124, 96
        %v1139 = vpop.permute.xlu0 %1138
        %1141 = vst.msk [vmem:[#allocation3] sm:$0xff] %vm730, %v1139
        %1142 = vst.msk [vmem:[%s507] sm:$0xff] %vm730, %v1133
        %1143 = vst.msk [vmem:[%s511] sm:$0xff] %vm730, %v1139
        %v1144 = vld [vmem:[#allocation4] sm:$0xff]
        %v1145 = vld [vmem:[#allocation4 + $0x8] sm:$0xff]
        %v1146 = vld [vmem:[#allocation4 + $0x10] sm:$0xff]
        %v1147 = vld [vmem:[#allocation4 + $0x18] sm:$0xff]
        %v1148 = vld [vmem:[%s7] sm:$0xff]
        %v1149 = vld [vmem:[%s7 + $0x8] sm:$0xff]
        %v1150 = vld [vmem:[%s7 + $0x10] sm:$0xff]
        %v1151 = vld [vmem:[%s7 + $0x18] sm:$0xff]
        %v1152 = vld [vmem:[#allocation10] sm:$0x1]
        %v1154 = vlaneseq
        %v1155 = vshrl.u32 %v1154, 7
        %v1156 = vsub.s32 0, %v1155
        %v1157 = vrot.slane %v1152, %v1156
        %v1160 = vsel %vm730, %v1144, 0
        %v1163 = vsel %vm730, %v1145, 0
        %v1166 = vsel %vm730, %v1146, 0
        %v1169 = vsel %vm730, %v1147, 0
        %1171 = vmatprep.subr.mxu0 0.0
        %1172 = vmatpush1.msra.mxu0 0.0
        %1173 = vmatprep.subr.mxu0 0.0
        %1174 = vmatpush1.msra.mxu0 0.0
        %1175 = vmatprep.subr.mxu0 0.0
        %1176 = vmatpush1.msra.mxu0 0.0
        %1177 = vmatprep.subr.mxu0 0.0
        %1178 = vmatpush1.msra.mxu0 0.0
        %1179 = vmatprep.subr.mxu0 0.0
        %1180 = vmatpush1.msra.mxu0 0.0
        %1181 = vmatprep.subr.mxu0 0.0
        %1182 = vmatpush1.msra.mxu0 0.0
        %1183 = vmatprep.subr.mxu0 0.0
        %1184 = vmatpush1.msra.mxu0 0.0
        %1185 = vmatprep.subr.mxu0 0.0
        %1186 = vmatpush1.msra.mxu0 0.0
        %1187 = vmatprep.subr.mxu0 0.0
        %1188 = vmatpush1.msra.mxu0 0.0
        %1189 = vmatprep.subr.mxu0 0.0
        %1190 = vmatpush1.msra.mxu0 0.0
        %1191 = vmatprep.subr.mxu0 0.0
        %1192 = vmatpush1.msra.mxu0 0.0
        %1193 = vmatprep.subr.mxu0 0.0
        %1194 = vmatpush1.msra.mxu0 0.0
        %1195 = vmatprep.subr.mxu0 0.0
        %1196 = vmatpush1.msra.mxu0 %v1151
        %1197 = vmatprep.subr.mxu0 0.0
        %1198 = vmatpush1.msra.mxu0 %v1150
        %1199 = vmatprep.subr.mxu0 0.0
        %1200 = vmatpush1.msra.mxu0 %v1149
        %1201 = vmatprep.subr.mxu0 0.0
        %1202 = vmatpush1.msra.mxu0 %v1148
        %1203 = vmatprep.subr.mxu0 0.0
        %1204 = vmatpush2.msra.mxu0 0.0
        %1205 = vmatprep.subr.mxu0 0.0
        %1206 = vmatpush2.msra.mxu0 0.0
        %1207 = vmatprep.subr.mxu0 0.0
        %1208 = vmatpush2.msra.mxu0 0.0
        %1209 = vmatprep.subr.mxu0 0.0
        %1210 = vmatpush2.msra.mxu0 0.0
        %1211 = vmatprep.subr.mxu0 0.0
        %1212 = vmatpush2.msra.mxu0 0.0
        %1213 = vmatprep.subr.mxu0 0.0
        %1214 = vmatpush2.msra.mxu0 0.0
        %1215 = vmatprep.subr.mxu0 0.0
        %1216 = vmatpush2.msra.mxu0 0.0
        %1217 = vmatprep.subr.mxu0 0.0
        %1218 = vmatpush2.msra.mxu0 0.0
        %1219 = vmatprep.subr.mxu0 0.0
        %1220 = vmatpush2.msra.mxu0 0.0
        %1221 = vmatprep.subr.mxu0 0.0
        %1222 = vmatpush2.msra.mxu0 0.0
        %1223 = vmatprep.subr.mxu0 0.0
        %1224 = vmatpush2.msra.mxu0 0.0
        %1225 = vmatprep.subr.mxu0 0.0
        %1226 = vmatpush2.msra.mxu0 0.0
        %1227 = vmatprep.subr.mxu0 0.0
        %1228 = vmatpush2.msra.mxu0 0.0
        %1229 = vmatprep.subr.mxu0 0.0
        %1230 = vmatpush2.msra.mxu0 0.0
        %1231 = vmatprep.subr.mxu0 0.0
        %1232 = vmatpush2.msra.mxu0 0.0
        %1233 = vmatprep.subr.mxu0 0.0
        %1234 = vmatpush2.msra.mxu0 0.0
        %1235 = vmatprep.mubr.f32.mxu0 0.0
        %1236 = vmatmul.mubr.f32.gmra.mxu0 %v1160
        %v1237 = vpop.f32.mrf.mxu0
        %v1238 = vadd.f32 %v1157, %v1237
        %v1239 = vpop.f32.mrf.mxu0
        %1240 = vmatprep.mubr.f32.mxu0 0.0
        %1241 = vmatmul.mubr.f32.gmra.mxu0 %v1163
        %v1242 = vpop.f32.mrf.mxu0
        %v1243 = vadd.f32 %v1157, %v1242
        %v1244 = vpop.f32.mrf.mxu0
        %1245 = vmatprep.mubr.f32.mxu0 0.0
        %1246 = vmatmul.mubr.f32.gmra.mxu0 %v1166
        %v1247 = vpop.f32.mrf.mxu0
        %v1248 = vadd.f32 %v1157, %v1247
        %v1249 = vpop.f32.mrf.mxu0
        %1250 = vmatprep.mubr.f32.mxu0 0.0
        %1251 = vmatmul.mubr.f32.gmra.mxu0 %v1169
        %v1252 = vpop.f32.mrf.mxu0
        %v1253 = vadd.f32 %v1157, %v1252
        %v1254 = vpop.f32.mrf.mxu0
        %1255 = vdwg.mxu0
        %v1256 = vlaneseq
        %v1257 = vand.u32 %v1256, 127
        %vm1258 = vcmp.lt.s32.totalorder %v1257, 4
        %vm1259 = vcmp.ge.s32.totalorder %v1257, 4
        %vm1260 = vcmp.lt.s32.totalorder %v1257, 12
        %vm1261 = vmand %vm1259, %vm1260
        %vm1262 = vcmp.ge.s32.totalorder %v1257, 12
        %vm1263 = vcmp.lt.s32.totalorder %v1257, 20
        %vm1264 = vmand %vm1262, %vm1263
        %vm1265 = vcmp.ge.s32.totalorder %v1257, 20
        %vm1266 = vcmp.lt.s32.totalorder %v1257, 24
        %vm1267 = vmand %vm1265, %vm1266
        %vm1268 = vcmp.ge.s32.totalorder %v1257, 24
        %vm1269 = vcmp.lt.s32.totalorder %v1257, 27
        %vm1270 = vmand %vm1268, %vm1269
        %v1271 = vsel %vm1258, %v1238, -1e+30
        %v1272 = vsel %vm1258, %v1243, -1e+30
        %v1273 = vsel %vm1258, %v1248, -1e+30
        %v1274 = vsel %vm1258, %v1253, -1e+30
        %1275 = vmax.xlane.f32.xlu0 %v1271
        %v1276 = vpop.xlane.xlu0 %1275
        %1277 = vmax.xlane.f32.xlu0 %v1272
        %v1278 = vpop.xlane.xlu0 %1277
        %1279 = vmax.xlane.f32.xlu0 %v1273
        %v1280 = vpop.xlane.xlu0 %1279
        %1281 = vmax.xlane.f32.xlu0 %v1274
        %v1282 = vpop.xlane.xlu0 %1281
        %v1283 = vsel %vm1270, %v1238, -1e+30
        %v1284 = vsel %vm1270, %v1243, -1e+30
        %v1285 = vsel %vm1270, %v1248, -1e+30
        %v1286 = vsel %vm1270, %v1253, -1e+30
        %1287 = vmax.xlane.f32.xlu0 %v1283
        %v1288 = vpop.xlane.xlu0 %1287
        %1289 = vmax.xlane.f32.xlu0 %v1284
        %v1290 = vpop.xlane.xlu0 %1289
        %1291 = vmax.xlane.f32.xlu0 %v1285
        %v1292 = vpop.xlane.xlu0 %1291
        %1293 = vmax.xlane.f32.xlu0 %v1286
        %v1294 = vpop.xlane.xlu0 %1293
        %v1295 = vsub.f32 %v1238, %v1276
        %v1296 = vsub.f32 %v1243, %v1278
        %v1297 = vsub.f32 %v1248, %v1280
        %v1298 = vsub.f32 %v1253, %v1282
        %v1299 = vsub.f32 %v1238, %v1288
        %v1300 = vsub.f32 %v1243, %v1290
        %v1301 = vsub.f32 %v1248, %v1292
        %v1302 = vsub.f32 %v1253, %v1294
        %v1303 = vsel %vm1264, %v1238, -1e+30
        %v1304 = vsel %vm1264, %v1243, -1e+30
        %v1305 = vsel %vm1264, %v1248, -1e+30
        %v1306 = vsel %vm1264, %v1253, -1e+30
        %v1307 = vsel %vm1270, %v1299, %v1303
        %v1308 = vsel %vm1270, %v1300, %v1304
        %v1309 = vsel %vm1270, %v1301, %v1305
        %v1310 = vsel %vm1270, %v1302, %v1306
        %v1311 = vsel %vm1258, %v1295, %v1307
        %v1312 = vsel %vm1258, %v1296, %v1308
        %v1313 = vsel %vm1258, %v1297, %v1309
        %v1314 = vsel %vm1258, %v1298, %v1310
        %v1315 = vmul.f32 %v1311, 1.442695
        %v1316 = vpow.pop %v1315
        %v1317 = vmul.f32 %v1312, 1.442695
        %v1318 = vpow.pop %v1317
        %v1319 = vmul.f32 %v1313, 1.442695
        %v1320 = vpow.pop %v1319
        %v1321 = vmul.f32 %v1314, 1.442695
        %v1322 = vpow.pop %v1321
        %v1323 = vsel %vm1258, %v1316, 0.0
        %v1324 = vsel %vm1258, %v1318, 0.0
        %v1325 = vsel %vm1258, %v1320, 0.0
        %v1326 = vsel %vm1258, %v1322, 0.0
        %1327 = vadd.xlane.f32.xlu0 %v1323
        %v1328 = vpop.xlane.xlu0 %1327
        %1329 = vadd.xlane.f32.xlu0 %v1324
        %v1330 = vpop.xlane.xlu0 %1329
        %1331 = vadd.xlane.f32.xlu0 %v1325
        %v1332 = vpop.xlane.xlu0 %1331
        %1333 = vadd.xlane.f32.xlu0 %v1326
        %v1334 = vpop.xlane.xlu0 %1333
        %v1335 = vrcp.pop %v1328
        %v1336 = vrcp.pop %v1330
        %v1337 = vrcp.pop %v1332
        %v1338 = vrcp.pop %v1334
        %v1339 = vmul.f32 %v1316, %v1335
        %v1340 = vmul.f32 %v1318, %v1336
        %v1341 = vmul.f32 %v1320, %v1337
        %v1342 = vmul.f32 %v1322, %v1338
        %v1343 = vsel %vm1270, %v1316, 0.0
        %v1344 = vsel %vm1270, %v1318, 0.0
        %v1345 = vsel %vm1270, %v1320, 0.0
        %v1346 = vsel %vm1270, %v1322, 0.0
        %1347 = vadd.xlane.f32.xlu0 %v1343
        %v1348 = vpop.xlane.xlu0 %1347
        %1349 = vadd.xlane.f32.xlu0 %v1344
        %v1350 = vpop.xlane.xlu0 %1349
        %1351 = vadd.xlane.f32.xlu0 %v1345
        %v1352 = vpop.xlane.xlu0 %1351
        %1353 = vadd.xlane.f32.xlu0 %v1346
        %v1354 = vpop.xlane.xlu0 %1353
        %v1355 = vrcp.pop %v1348
        %v1356 = vrcp.pop %v1350
        %v1357 = vrcp.pop %v1352
        %v1358 = vrcp.pop %v1354
        %v1359 = vmul.f32 %v1316, %v1355
        %v1360 = vmul.f32 %v1318, %v1356
        %v1361 = vmul.f32 %v1320, %v1357
        %v1362 = vmul.f32 %v1322, %v1358
        %v1363 = vtanh.pop %v1238
        %v1364 = vtanh.pop %v1243
        %v1365 = vtanh.pop %v1248
        %v1366 = vtanh.pop %v1253
        %v1367 = vsel %vm1270, %v1359, 0.0
        %v1368 = vsel %vm1270, %v1360, 0.0
        %v1369 = vsel %vm1270, %v1361, 0.0
        %v1370 = vsel %vm1270, %v1362, 0.0
        %v1371 = vsel %vm1267, %v1363, %v1367
        %v1372 = vsel %vm1267, %v1364, %v1368
        %v1373 = vsel %vm1267, %v1365, %v1369
        %v1374 = vsel %vm1267, %v1366, %v1370
        %v1375 = vsel %vm1264, %v1316, %v1371
        %v1376 = vsel %vm1264, %v1318, %v1372
        %v1377 = vsel %vm1264, %v1320, %v1373
        %v1378 = vsel %vm1264, %v1322, %v1374
        %v1379 = vsel %vm1261, %v1238, %v1375
        %v1380 = vsel %vm1261, %v1243, %v1376
        %v1381 = vsel %vm1261, %v1248, %v1377
        %v1382 = vsel %vm1261, %v1253, %v1378
        %v1383 = vsel %vm1258, %v1339, %v1379
        %v1384 = vsel %vm1258, %v1340, %v1380
        %v1385 = vsel %vm1258, %v1341, %v1381
        %v1386 = vsel %vm1258, %v1342, %v1382
        %1387 = vst [vmem:[%s502] sm:$0xff] %v1383
        %1388 = vst [vmem:[%s502 + $0x8] sm:$0xff] %v1384
        %1389 = vst [vmem:[%s502 + $0x10] sm:$0xff] %v1385
        %1390 = vst [vmem:[%s502 + $0x18] sm:$0xff] %v1386
        %s1391 = smul.u32 4, %s31
        %p1392 = scmp.lt.s32.totalorder %s1391, 7
        %s1393 = scalar_select %p1392, %s1391, 7
        %p1394 = scmp.lt.s32.totalorder %s30, 0
        %s1395 = scalar_select %p1394, %s30, 0
        %s1396 = sadd.s32 %s1395, %s1393
        %s1397 = smul.addr %s1396, 8
        %s1398 = scalar_lea.vmem %s9, %s1397
        %p1399 = scmp.lt.s32.totalorder %s30, 0
        %s1400 = scalar_select %p1399, %s30, 0
        %s1401 = smul.addr %s1400, 8
        %s1402 = scalar_lea.vmem %s10, %s1401
        %p1403 = scmp.lt.s32.totalorder %s30, 0
        %s1404 = scalar_select %p1403, %s30, 0
        %s1405 = smul.addr %s1404, 8
        %s1406 = scalar_lea.vmem %s11, %s1405
        // Predicated region
        $region77: #{decoder_forward.1} parent=55 // pred_check
          %p1407 = pneg %p259
        $region78: #{decoder_forward.1} parent=55 // pred_check_branch
          %1409 = sbr.rel (%p1407) target = $region80
        $region79: #{decoder_forward.1} parent=55 // pred_region
          %s1410 = smul.u32 4, %s31
        $region80: #{decoder_forward.1} parent=55 // pred_fallthru
          _
        // Predicated region
        $region81: #{decoder_forward.1} parent=55 // pred_check
          %p1411 = pneg %p285
        $region82: #{decoder_forward.1} parent=55 // pred_check_branch
          %1413 = sbr.rel (%p1411) target = $region84
        $region83: #{decoder_forward.1} parent=55 // pred_region
          _
        $region84: #{decoder_forward.1} parent=55 // pred_fallthru
          _
        // Predicated region
        $region85: #{decoder_forward.1} parent=55 // pred_check
          %p1414 = pneg %p311
        $region86: #{decoder_forward.1} parent=55 // pred_check_branch
          %1416 = sbr.rel (%p1414) target = $region88
        $region87: #{decoder_forward.1} parent=55 // pred_region
          _
        $region88: #{decoder_forward.1} parent=55 // pred_fallthru
          _
        // Predicated region
        $region89: #{decoder_forward.1} parent=55 // pred_check
          %p1417 = pneg %p285
        $region90: #{decoder_forward.1} parent=55 // pred_check_branch
          %1419 = sbr.rel (%p1417) target = $region92
        $region91: #{decoder_forward.1} parent=55 // pred_region
          %p1420 = scmp.lt.s32.totalorder %s30, 0
          %s1421 = scalar_select %p1420, %s30, 0
          %s1422 = smul.addr %s1421, 8
          %s1423 = scalar_lea.vmem %s10, %s1422
        $region92: #{decoder_forward.1} parent=55 // pred_fallthru
          _
        // Predicated region
        $region93: #{decoder_forward.1} parent=55 // pred_check
          %p1424 = pneg %p311
        $region94: #{decoder_forward.1} parent=55 // pred_check_branch
          %1426 = sbr.rel (%p1424) target = $region96
        $region95: #{decoder_forward.1} parent=55 // pred_region
          %p1427 = scmp.lt.s32.totalorder %s30, 0
          %s1428 = scalar_select %p1427, %s30, 0
          %s1429 = smul.addr %s1428, 8
          %s1430 = scalar_lea.vmem %s11, %s1429
        $region96: #{decoder_forward.1} parent=55 // pred_fallthru
          _
      $region56: #{decoder_forward.1} parent=5 // pred_fallthru
        _
      %p1431 = scmp.le.s32.totalorder 2, %s21
      // Predicated region
      $region97: #{decoder_forward.1} parent=5 // pred_check
        %p1432 = pneg %p1431
      $region98: #{decoder_forward.1} parent=5 // pred_check_branch
        %1434 = sbr.rel (%p1432) target = $region100
      $region99: #{decoder_forward.1} parent=5 // pred_region
        %s1435 = ssub.s32 %s21, 2
        // Predicated region
        $region101: #{decoder_forward.1} parent=99 // pred_check
          %p1436 = pneg %p265
        $region102: #{decoder_forward.1} parent=99 // pred_check_branch
          %1438 = sbr.rel (%p1436) target = $region104
        $region103: #{decoder_forward.1} parent=99 // pred_region
          %s1439 = smul.u32 4, %s33
          %p1440 = scmp.lt.s32.totalorder %s1439, 7
          %s1441 = scalar_select %p1440, %s1439, 7
          %p1442 = scmp.lt.s32.totalorder %s32, 0
          %s1443 = scalar_select %p1442, %s32, 0
          %s1444 = sadd.s32 %s1443, %s1441
          %s1445 = smul.addr %s1444, 8
          %s1446 = scalar_lea.vmem %s9, %s1445
        $region104: #{decoder_forward.1} parent=99 // pred_fallthru
          _
      $region100: #{decoder_forward.1} parent=5 // pred_fallthru
        _
    $region6: #{decoder_forward.1} parent=1 // loop_footer
      %s25 = sadd.s32 1, %s21
    $region7: #{decoder_forward.1} parent=1 // loop_footer_branch
      %20 = sbr.rel target = $region3
    $region8: #{decoder_forward.1} parent=1 // loop_exit
      _
    %1447 = vsyncpa [#allocation6], 1
    %s1448 = scalar_lea.sflag [#allocation6], 1
    %1449 = vsyncpa %s1448, 1
    %1450 = vsyncpa [#allocation8], 1
    %1451 = vsyncpa [#allocation11], 1

</llo_original>
